<compile_context>
chip_gen: v6e
topology: v6e:2x2x1
jax: 0.10.0
libtpu: 0.0.40
codegen_flags: <defaults>
</compile_context>

<pallas_src>
import math
import functools

import jax
import jax.numpy as jnp
from jax import lax
from jax.experimental import pallas as pl
from jax.experimental.pallas import tpu as pltpu


# -----------------------------------------------------------------------------
# Fused multi-layer LSTM kernel. grid = (num_layers,), sequential ("arbitrary").
# Gate columns of the supplied weights/bias are pre-permuted to [i, f, o, g].
# -----------------------------------------------------------------------------
def _fused_lstm_kernel(x_ref, wih_ref, whh_ref, b_ref, out_ref,
                       pre_sc, c_sc, *, T, Bp, D, unroll):
    layer = pl.program_id(0)

    # Layer 0: stage (pe + condition) into the VMEM-resident output slab.
    # For layers > 0 the slab already holds the previous layer's hidden states.
    @pl.when(layer == 0)
    def _():
        out_ref[...] = x_ref[...]

    w_ih = wih_ref[...]                     # (D, 4D) bf16
    w_hh = whh_ref[...]                     # (D, 4D) bf16

    # Hoisted input projection for ALL timesteps at once (MXU-shaped matmul),
    # bias folded in once per layer.  pre_sc captures everything this layer
    # needs from its input, so the slab rows may be overwritten afterwards.
    pre_sc[...] = (
        jnp.dot(out_ref[...].astype(jnp.bfloat16), w_ih,
                preferred_element_type=jnp.float32)
        + b_ref[...]                        # (1, 4D) f32, broadcast once
    )

    # ---- t = 0 peeled: h0 = c0 = 0, so gates are just the pre-projection. ----
    g0 = pre_sc[pl.ds(0, Bp), :]
    s0 = jax.nn.sigmoid(g0[:, :3 * D])                  # one pass: [i | f | o]
    c0 = s0[:, 0 * D:1 * D] * jnp.tanh(g0[:, 3 * D:])   # f * c_prev == 0
    h0 = s0[:, 2 * D:3 * D] * jnp.tanh(c0)
    c_sc[...] = c0
    out_ref[pl.ds(0, Bp), :] = h0

    # ---- t = 1 .. T-1: serial recurrence, one small h @ W_hh per step. ----
    def step(t, carry):
        row = pl.multiple_of(t * Bp, Bp)    # Bp is a multiple of 8 -> aligned
        prev = pl.multiple_of(row - Bp, Bp)
        h_prev = out_ref[pl.ds(prev, Bp), :]            # h_{t-1}, f32
        c_prev = c_sc[...]

        gates = pre_sc[pl.ds(row, Bp), :] + jnp.dot(
            h_prev.astype(jnp.bfloat16), w_hh,
            preferred_element_type=jnp.float32)

        sig = jax.nn.sigmoid(gates[:, :3 * D])          # one EUP pass: i, f, o
        g_g = jnp.tanh(gates[:, 3 * D:])                # one EUP pass: g
        c_new = sig[:, 1 * D:2 * D] * c_prev + sig[:, 0 * D:1 * D] * g_g
        h_new = sig[:, 2 * D:3 * D] * jnp.tanh(c_new)

        c_sc[...] = c_new
        out_ref[pl.ds(row, Bp), :] = h_new              # single store of h
        return carry

    lax.fori_loop(1, T, step, 0, unroll=unroll)
    # The output slab is written back to HBM once, after the last layer.


def fused_lstm_pallas(x2d, w_ih_bf16, w_hh_bf16, bias_f32, *, T, Bp, D):
    """x2d: (T*Bp, D) f32 time-major-flattened input (row = t*Bp + b).
    w_*_bf16: (L, D, 4D) bf16 transposed weights, gate columns permuted to
    [i, f, o, g]. bias_f32: (L, 1, 4D) f32, same permutation.
    Returns (T*Bp, D) f32 hidden states of the last layer."""
    L = w_ih_bf16.shape[0]
    TB = T * Bp
    unroll = True if T <= 16 else 8         # bounded unroll for long sequences
    kernel = functools.partial(_fused_lstm_kernel, T=T, Bp=Bp, D=D,
                               unroll=unroll)

    # Advisory cost hint for XLA's scheduler around the custom call.
    flops = L * (2 * TB * D * 4 * D         # hoisted x-projection
                 + 2 * T * Bp * D * 4 * D   # recurrent h-projection
                 + 10 * T * Bp * D)         # cell elementwise
    transcend = L * T * Bp * 5 * D
    bytes_acc = 2 * TB * D * 4 + L * (2 * D * 4 * D * 2 + 4 * D * 4)
    cost = pl.CostEstimate(flops=flops, transcendentals=transcend,
                           bytes_accessed=bytes_acc)

    # Explicit VMEM budget: in/out slabs (counted double-buffered to be safe),
    # the (TB, 4D) f32 pre-gate slab, double-buffered weights, cell state, slack.
    vmem_needed = (4 * TB * D * 4 + TB * 4 * D * 4
                   + 2 * (2 * D * 4 * D * 2 + 4 * D * 4) + Bp * D * 4
                   + (1 << 20))
    vmem_limit = int(min(max(vmem_needed, 16 * 1024 * 1024),
                         48 * 1024 * 1024))

    # TODO(synk): once TB*4D f32 approaches v7x's 64 MiB VMEM, tile the hoisted
    # projection over T in chunks (bf16 pre-gates), mark the constant-index
    # in/out slabs with pipeline_mode=pl.Buffered(1), and add a leading
    # "parallel" batch-half grid axis (needs Bp >= 16) for v7x's 2nd TensorCore.
    # TODO(synk): on v5e, benchmark a VPU broadcast-MAC formulation of the tiny
    # per-step (Bp, D) @ (D, 4D) h-projection (MXU round-trip latency bound).
    return pl.pallas_call(
        kernel,
        out_shape=jax.ShapeDtypeStruct((TB, D), jnp.float32),
        grid_spec=pltpu.PrefetchScalarGridSpec(
            num_scalar_prefetch=0,
            grid=(L,),
            in_specs=[
                pl.BlockSpec((TB, D), lambda l: (0, 0)),              # layer-0 input
                pl.BlockSpec((None, D, 4 * D), lambda l: (l, 0, 0)),  # W_ih^T bf16
                pl.BlockSpec((None, D, 4 * D), lambda l: (l, 0, 0)),  # W_hh^T bf16
                pl.BlockSpec((None, 1, 4 * D), lambda l: (l, 0, 0)),  # b_ih + b_hh
            ],
            out_specs=pl.BlockSpec((TB, D), lambda l: (0, 0)),
            scratch_shapes=[
                pltpu.VMEM((TB, 4 * D), jnp.float32),    # pre-gates for all t
                pltpu.VMEM((Bp, D), jnp.float32),        # cell state c
            ],
        ),
        compiler_params=pltpu.CompilerParams(
            dimension_semantics=("arbitrary",),          # slab carried across layers
            vmem_limit_bytes=vmem_limit),
        cost_estimate=cost,
    )(x2d, w_ih_bf16, w_hh_bf16, bias_f32)


# -----------------------------------------------------------------------------
# Model wrapper (mirrors LstmModel.forward)
# -----------------------------------------------------------------------------
def _regroup_ifog(a, d):
    """Reorder a leading 4*d axis from PyTorch's [i, f, g, o] to [i, f, o, g]."""
    return jnp.concatenate(
        [a[0:d], a[d:2 * d], a[3 * d:4 * d], a[2 * d:3 * d]], axis=0)


class LstmModelPallas:
    def __init__(self, d_model, num_layers, positional_embedding, key):
        self.d_model = d_model
        self.num_layers = num_layers
        self.pe = positional_embedding[None, :, :]      # (1, T, D), buffer
        bound = 1.0 / math.sqrt(d_model)   # nn.LSTM init: U(-1/sqrt(H), 1/sqrt(H))
        wih_ref, whh_ref, b_ref = [], [], []
        wih_k, whh_k, b_k = [], [], []
        for _ in range(num_layers):
            key, k1, k2, k3, k4 = jax.random.split(key, 5)
            w_ih = jax.random.uniform(k1, (4 * d_model, d_model), jnp.float32,
                                      -bound, bound)
            w_hh = jax.random.uniform(k2, (4 * d_model, d_model), jnp.float32,
                                      -bound, bound)
            b_ih = jax.random.uniform(k3, (4 * d_model,), jnp.float32,
                                      -bound, bound)
            b_hh = jax.random.uniform(k4, (4 * d_model,), jnp.float32,
                                      -bound, bound)
            # f32 masters in PyTorch's [i, f, g, o] order (reference path).
            wih_ref.append(w_ih.T)                       # (D, 4D)
            whh_ref.append(w_hh.T)                       # (D, 4D)
            b_ref.append((b_ih + b_hh)[None, :])         # (1, 4D)
            # Kernel copies: gate groups permuted to [i, f, o, g], bf16 weights.
            wih_k.append(_regroup_ifog(w_ih, d_model).T)
            whh_k.append(_regroup_ifog(w_hh, d_model).T)
            b_k.append(_regroup_ifog(b_ih + b_hh, d_model)[None, :])
        self.w_ih_f32 = jnp.stack(wih_ref)               # (L, D, 4D) reference
        self.w_hh_f32 = jnp.stack(whh_ref)
        self.bias_f32 = jnp.stack(b_ref)                 # (L, 1, 4D) reference
        self.w_ih_k = jnp.stack(wih_k).astype(jnp.bfloat16)   # kernel params
        self.w_hh_k = jnp.stack(whh_k).astype(jnp.bfloat16)
        self.bias_k = jnp.stack(b_k)                     # (L, 1, 4D) f32
        # TODO(synk): nn.LSTM inter-layer dropout is train-time only; the eval
        # forward applies no dropout, so it is intentionally omitted here.

    def __call__(self, output_shape, condition):
        assert condition.ndim == 3
        B = output_shape[0]
        T, D = self.pe.shape[1], self.pe.shape[2]
        # pe.repeat(B,1,1) + condition (plain-JAX glue), batch_first -> time-major
        x = jnp.broadcast_to(self.pe, (B, T, D)) + condition
        x = jnp.transpose(x, (1, 0, 2))                  # (T, B, D)
        # Pad batch to a multiple of 8 sublanes; flatten to a (T*Bp, D) slab.
        Bp = max(8, ((B + 7) // 8) * 8)
        x = jnp.pad(x, ((0, 0), (0, Bp - B), (0, 0)))
        x2d = x.reshape(T * Bp, D)
        out2d = fused_lstm_pallas(x2d, self.w_ih_k, self.w_hh_k, self.bias_k,
                                  T=T, Bp=Bp, D=D)
        out = out2d.reshape(T, Bp, D)[:, :B, :]
        return jnp.transpose(out, (1, 0, 2))             # (B, T, D)


# -----------------------------------------------------------------------------
# Pure-JAX references (lax.scan) for correctness check
# -----------------------------------------------------------------------------
def lstm_ref(x_btd, w_ih_stack, w_hh_stack, bias_stack, *, cast_bf16):
    x = jnp.transpose(x_btd, (1, 0, 2))                  # (T, B, D)
    L = w_ih_stack.shape[0]
    B, D = x.shape[1], x.shape[2]
    for l in range(L):
        wih, whh, b = w_ih_stack[l], w_hh_stack[l], bias_stack[l]
        if cast_bf16:
            wih = wih.astype(jnp.bfloat16)
            whh = whh.astype(jnp.bfloat16)

        def step(carry, x_t, wih=wih, whh=whh, b=b):
            h, c = carry
            xt = x_t.astype(jnp.bfloat16) if cast_bf16 else x_t
            hh = h.astype(jnp.bfloat16) if cast_bf16 else h
            g = (jnp.dot(xt, wih, preferred_element_type=jnp.float32)
                 + jnp.dot(hh, whh, preferred_element_type=jnp.float32) + b)
            i = jax.nn.sigmoid(g[:, 0 * D:1 * D])
            f = jax.nn.sigmoid(g[:, 1 * D:2 * D])
            gg = jnp.tanh(g[:, 2 * D:3 * D])
            o = jax.nn.sigmoid(g[:, 3 * D:4 * D])
            c = f * c + i * gg
            h = o * jnp.tanh(c)
            return (h, c), h

        init = (jnp.zeros((B, D), jnp.float32), jnp.zeros((B, D), jnp.float32))
        _, hs = lax.scan(step, init, x)
        x = hs
    return jnp.transpose(x, (1, 0, 2))


if __name__ == "__main__":
    # config: {'d_model': 32, 'num_layers': 2, 'dropout': 0.0}
    B, T, D, L = 2, 8, 32, 2

    key = jax.random.PRNGKey(0)
    k_pe, k_cond, k_params = jax.random.split(key, 3)

    pe = jax.random.normal(k_pe, (T, D), jnp.float32)          # positional_embedding
    condition = jax.random.normal(k_cond, (B, T, D), jnp.float32)

    model = LstmModelPallas(d_model=D, num_layers=L,
                            positional_embedding=pe, key=k_params)

    out = model((B, T, D), condition)
    out = jax.block_until_ready(out)
    assert out.shape == (B, T, D)

    x_in = jnp.broadcast_to(pe[None], (B, T, D)) + condition
    # Tight check against a reference that replicates the kernel's bf16 matmul
    # inputs (f32 accumulation), and a loose semantic check against full f32.
    ref_b = lstm_ref(x_in, model.w_ih_f32, model.w_hh_f32, model.bias_f32,
                     cast_bf16=True)
    ref_f = lstm_ref(x_in, model.w_ih_f32, model.w_hh_f32, model.bias_f32,
                     cast_bf16=False)
    assert jnp.allclose(out, ref_b, atol=2e-3, rtol=2e-3)
    assert jnp.allclose(out, ref_f, atol=2.5e-1, rtol=0.0)

    print("KERNEL_OK")
</pallas_src>

<mosaic_0001>
module attributes {stable_mosaic.version = 11 : i64} {
  func.func @_fused_lstm_kernel(%arg0: i32, %arg1: memref<64x32xf32, #tpu.memory_space<vmem>>, %arg2: memref<1x32x128xbf16, #tpu.memory_space<vmem>>, %arg3: memref<1x32x128xbf16, #tpu.memory_space<vmem>>, %arg4: memref<1x1x128xf32, #tpu.memory_space<vmem>>, %arg5: memref<64x32xf32, #tpu.memory_space<vmem>>, %arg6: memref<64x128xf32, #tpu.memory_space<vmem>>, %arg7: memref<8x32xf32, #tpu.memory_space<vmem>>) attributes {dimension_semantics = [#tpu.dimension_semantics<arbitrary>], iteration_bounds = array<i64: 2>, scalar_prefetch = 0 : i64, scratch_operands = 2 : i64, tpu.core_type = #tpu.core_type<tc>, window_params = [{pipeline_mode = #tpu.pipeline_mode<synchronous>, transform_indices = @transform_0, window_bounds = array<i64: 64, 32>}, {transform_indices = @transform_1, window_bounds = array<i64: 1, 32, 128>}, {transform_indices = @transform_2, window_bounds = array<i64: 1, 32, 128>}, {transform_indices = @transform_3, window_bounds = array<i64: 1, 1, 128>}, {pipeline_mode = #tpu.pipeline_mode<synchronous>, transform_indices = @transform_4, window_bounds = array<i64: 64, 32>}]} {
    %c0_i32 = arith.constant 0 : i32
    %0 = arith.cmpi eq, %arg0, %c0_i32 : i32
    %1 = arith.extui %0 : i1 to i32
    %c0_i32_0 = arith.constant 0 : i32
    %2 = arith.cmpi ne, %1, %c0_i32_0 : i32
    scf.if %2 {
      %c0_97 = arith.constant 0 : index
      %c0_98 = arith.constant 0 : index
      %248 = vector.load %arg1[%c0_97, %c0_98] : memref<64x32xf32, #tpu.memory_space<vmem>>, vector<64x32xf32>
      %c0_99 = arith.constant 0 : index
      %c0_100 = arith.constant 0 : index
      %249 = vector.load %arg5[%c0_99, %c0_100] : memref<64x32xf32, #tpu.memory_space<vmem>>, vector<64x32xf32>
      tpu.vector_store %arg5[%c0_99, %c0_100], %248 {strides = array<i32>} : memref<64x32xf32, #tpu.memory_space<vmem>>, vector<64x32xf32>,
    } else {
    }
    %c0 = arith.constant 0 : index
    %c0_1 = arith.constant 0 : index
    %c0_2 = arith.constant 0 : index
    %3 = vector.load %arg2[%c0, %c0_1, %c0_2] : memref<1x32x128xbf16, #tpu.memory_space<vmem>>, vector<1x32x128xbf16>
    %4 = vector.shape_cast %3 : vector<1x32x128xbf16> to vector<32x128xbf16>
    %c0_3 = arith.constant 0 : index
    %c0_4 = arith.constant 0 : index
    %c0_5 = arith.constant 0 : index
    %5 = vector.load %arg3[%c0_3, %c0_4, %c0_5] : memref<1x32x128xbf16, #tpu.memory_space<vmem>>, vector<1x32x128xbf16>
    %6 = vector.shape_cast %5 : vector<1x32x128xbf16> to vector<32x128xbf16>
    %c0_6 = arith.constant 0 : index
    %c0_7 = arith.constant 0 : index
    %7 = vector.load %arg5[%c0_6, %c0_7] : memref<64x32xf32, #tpu.memory_space<vmem>>, vector<64x32xf32>
    %8 = arith.truncf %7 : vector<64x32xf32> to vector<64x32xbf16>
    %cst = arith.constant dense<0.000000e+00> : vector<64x128xf32>
    %9 = tpu.matmul %8, %4, %cst {dimension_numbers = #tpu.dot_dimension_numbers<[1], [0], [0], [1], [0, 0, 1, 1], [], []>} : vector<64x32xbf16>, vector<32x128xbf16>, vector<64x128xf32> -> vector<64x128xf32>
    %c0_8 = arith.constant 0 : index
    %c0_9 = arith.constant 0 : index
    %c0_10 = arith.constant 0 : index
    %10 = vector.load %arg4[%c0_8, %c0_9, %c0_10] : memref<1x1x128xf32, #tpu.memory_space<vmem>>, vector<1x1x128xf32>
    %11 = vector.shape_cast %10 : vector<1x1x128xf32> to vector<1x128xf32>
    %12 = vector.broadcast %11 : vector<1x128xf32> to vector<64x128xf32>
    %13 = arith.addf %9, %12 : vector<64x128xf32>
    %c0_11 = arith.constant 0 : index
    %c0_12 = arith.constant 0 : index
    %14 = vector.load %arg6[%c0_11, %c0_12] : memref<64x128xf32, #tpu.memory_space<vmem>>, vector<64x128xf32>
    tpu.vector_store %arg6[%c0_11, %c0_12], %13 {strides = array<i32>} : memref<64x128xf32, #tpu.memory_space<vmem>>, vector<64x128xf32>,
    %c0_13 = arith.constant 0 : index
    %c0_14 = arith.constant 0 : index
    %15 = vector.load %arg6[%c0_13, %c0_14] : memref<64x128xf32, #tpu.memory_space<vmem>>, vector<8x128xf32>
    %16 = vector.extract_strided_slice %15 {offsets = [0, 0], sizes = [8, 96], strides = [1, 1]} : vector<8x128xf32> to vector<8x96xf32>
    %17 = arith.negf %16 : vector<8x96xf32>
    %18 = math.exp %17 : vector<8x96xf32>
    %cst_15 = arith.constant 1.000000e+00 : f32
    %19 = vector.broadcast %cst_15 : f32 to vector<8x96xf32>
    %20 = arith.addf %19, %18 : vector<8x96xf32>
    %21 = arith.divf %19, %20 : vector<8x96xf32>
    %22 = vector.extract_strided_slice %21 {offsets = [0, 0], sizes = [8, 32], strides = [1, 1]} : vector<8x96xf32> to vector<8x32xf32>
    %23 = vector.extract_strided_slice %15 {offsets = [0, 96], sizes = [8, 32], strides = [1, 1]} : vector<8x128xf32> to vector<8x32xf32>
    %24 = math.tanh %23 : vector<8x32xf32>
    %25 = arith.mulf %22, %24 : vector<8x32xf32>
    %26 = vector.extract_strided_slice %21 {offsets = [0, 64], sizes = [8, 32], strides = [1, 1]} : vector<8x96xf32> to vector<8x32xf32>
    %27 = math.tanh %25 : vector<8x32xf32>
    %28 = arith.mulf %26, %27 : vector<8x32xf32>
    %c0_16 = arith.constant 0 : index
    %c0_17 = arith.constant 0 : index
    %29 = vector.load %arg7[%c0_16, %c0_17] : memref<8x32xf32, #tpu.memory_space<vmem>>, vector<8x32xf32>
    tpu.vector_store %arg7[%c0_16, %c0_17], %25 {strides = array<i32>} : memref<8x32xf32, #tpu.memory_space<vmem>>, vector<8x32xf32>,
    %c0_18 = arith.constant 0 : index
    %c0_19 = arith.constant 0 : index
    %30 = vector.load %arg5[%c0_18, %c0_19] : memref<64x32xf32, #tpu.memory_space<vmem>>, vector<8x32xf32>
    tpu.vector_store %arg5[%c0_18, %c0_19], %28 {strides = array<i32>} : memref<64x32xf32, #tpu.memory_space<vmem>>, vector<8x32xf32>,
    %c1_i32 = arith.constant 1 : i32
    %c8_i32 = arith.constant 8 : i32
    %31 = arith.muli %c1_i32, %c8_i32 : i32
    %32 = tpu.assume_multiple %31, 8 : i32
    %c8_i32_20 = arith.constant 8 : i32
    %33 = arith.subi %32, %c8_i32_20 : i32
    %34 = tpu.assume_multiple %33, 8 : i32
    %35 = arith.index_cast %34 : i32 to index
    %c0_21 = arith.constant 0 : index
    %36 = vector.load %arg5[%35, %c0_21] : memref<64x32xf32, #tpu.memory_space<vmem>>, vector<8x32xf32>
    %c0_22 = arith.constant 0 : index
    %c0_23 = arith.constant 0 : index
    %37 = vector.load %arg7[%c0_22, %c0_23] : memref<8x32xf32, #tpu.memory_space<vmem>>, vector<8x32xf32>
    %38 = arith.index_cast %32 : i32 to index
    %c0_24 = arith.constant 0 : index
    %39 = vector.load %arg6[%38, %c0_24] : memref<64x128xf32, #tpu.memory_space<vmem>>, vector<8x128xf32>
    %40 = arith.truncf %36 : vector<8x32xf32> to vector<8x32xbf16>
    %cst_25 = arith.constant dense<0.000000e+00> : vector<8x128xf32>
    %41 = tpu.matmul %40, %6, %cst_25 {dimension_numbers = #tpu.dot_dimension_numbers<[1], [0], [0], [1], [0, 0, 1, 1], [], []>} : vector<8x32xbf16>, vector<32x128xbf16>, vector<8x128xf32> -> vector<8x128xf32>
    %42 = arith.addf %39, %41 : vector<8x128xf32>
    %43 = vector.extract_strided_slice %42 {offsets = [0, 0], sizes = [8, 96], strides = [1, 1]} : vector<8x128xf32> to vector<8x96xf32>
    %44 = arith.negf %43 : vector<8x96xf32>
    %45 = math.exp %44 : vector<8x96xf32>
    %cst_26 = arith.constant 1.000000e+00 : f32
    %46 = vector.broadcast %cst_26 : f32 to vector<8x96xf32>
    %47 = arith.addf %46, %45 : vector<8x96xf32>
    %48 = arith.divf %46, %47 : vector<8x96xf32>
    %49 = vector.extract_strided_slice %42 {offsets = [0, 96], sizes = [8, 32], strides = [1, 1]} : vector<8x128xf32> to vector<8x32xf32>
    %50 = math.tanh %49 : vector<8x32xf32>
    %51 = vector.extract_strided_slice %48 {offsets = [0, 32], sizes = [8, 32], strides = [1, 1]} : vector<8x96xf32> to vector<8x32xf32>
    %52 = arith.mulf %51, %37 : vector<8x32xf32>
    %53 = vector.extract_strided_slice %48 {offsets = [0, 0], sizes = [8, 32], strides = [1, 1]} : vector<8x96xf32> to vector<8x32xf32>
    %54 = arith.mulf %53, %50 : vector<8x32xf32>
    %55 = arith.addf %52, %54 : vector<8x32xf32>
    %56 = vector.extract_strided_slice %48 {offsets = [0, 64], sizes = [8, 32], strides = [1, 1]} : vector<8x96xf32> to vector<8x32xf32>
    %57 = math.tanh %55 : vector<8x32xf32>
    %58 = arith.mulf %56, %57 : vector<8x32xf32>
    %c0_27 = arith.constant 0 : index
    %c0_28 = arith.constant 0 : index
    %59 = vector.load %arg7[%c0_27, %c0_28] : memref<8x32xf32, #tpu.memory_space<vmem>>, vector<8x32xf32>
    tpu.vector_store %arg7[%c0_27, %c0_28], %55 {strides = array<i32>} : memref<8x32xf32, #tpu.memory_space<vmem>>, vector<8x32xf32>,
    %60 = arith.index_cast %32 : i32 to index
    %c0_29 = arith.constant 0 : index
    %61 = vector.load %arg5[%60, %c0_29] : memref<64x32xf32, #tpu.memory_space<vmem>>, vector<8x32xf32>
    tpu.vector_store %arg5[%60, %c0_29], %58 {strides = array<i32>} : memref<64x32xf32, #tpu.memory_space<vmem>>, vector<8x32xf32>,
    %c2_i32 = arith.constant 2 : i32
    %c8_i32_30 = arith.constant 8 : i32
    %62 = arith.muli %c2_i32, %c8_i32_30 : i32
    %63 = tpu.assume_multiple %62, 8 : i32
    %c8_i32_31 = arith.constant 8 : i32
    %64 = arith.subi %63, %c8_i32_31 : i32
    %65 = tpu.assume_multiple %64, 8 : i32
    %66 = arith.index_cast %65 : i32 to index
    %c0_32 = arith.constant 0 : index
    %67 = vector.load %arg5[%66, %c0_32] : memref<64x32xf32, #tpu.memory_space<vmem>>, vector<8x32xf32>
    %c0_33 = arith.constant 0 : index
    %c0_34 = arith.constant 0 : index
    %68 = vector.load %arg7[%c0_33, %c0_34] : memref<8x32xf32, #tpu.memory_space<vmem>>, vector<8x32xf32>
    %69 = arith.index_cast %63 : i32 to index
    %c0_35 = arith.constant 0 : index
    %70 = vector.load %arg6[%69, %c0_35] : memref<64x128xf32, #tpu.memory_space<vmem>>, vector<8x128xf32>
    %71 = arith.truncf %67 : vector<8x32xf32> to vector<8x32xbf16>
    %cst_36 = arith.constant dense<0.000000e+00> : vector<8x128xf32>
    %72 = tpu.matmul %71, %6, %cst_36 {dimension_numbers = #tpu.dot_dimension_numbers<[1], [0], [0], [1], [0, 0, 1, 1], [], []>} : vector<8x32xbf16>, vector<32x128xbf16>, vector<8x128xf32> -> vector<8x128xf32>
    %73 = arith.addf %70, %72 : vector<8x128xf32>
    %74 = vector.extract_strided_slice %73 {offsets = [0, 0], sizes = [8, 96], strides = [1, 1]} : vector<8x128xf32> to vector<8x96xf32>
    %75 = arith.negf %74 : vector<8x96xf32>
    %76 = math.exp %75 : vector<8x96xf32>
    %cst_37 = arith.constant 1.000000e+00 : f32
    %77 = vector.broadcast %cst_37 : f32 to vector<8x96xf32>
    %78 = arith.addf %77, %76 : vector<8x96xf32>
    %79 = arith.divf %77, %78 : vector<8x96xf32>
    %80 = vector.extract_strided_slice %73 {offsets = [0, 96], sizes = [8, 32], strides = [1, 1]} : vector<8x128xf32> to vector<8x32xf32>
    %81 = math.tanh %80 : vector<8x32xf32>
    %82 = vector.extract_strided_slice %79 {offsets = [0, 32], sizes = [8, 32], strides = [1, 1]} : vector<8x96xf32> to vector<8x32xf32>
    %83 = arith.mulf %82, %68 : vector<8x32xf32>
    %84 = vector.extract_strided_slice %79 {offsets = [0, 0], sizes = [8, 32], strides = [1, 1]} : vector<8x96xf32> to vector<8x32xf32>
    %85 = arith.mulf %84, %81 : vector<8x32xf32>
    %86 = arith.addf %83, %85 : vector<8x32xf32>
    %87 = vector.extract_strided_slice %79 {offsets = [0, 64], sizes = [8, 32], strides = [1, 1]} : vector<8x96xf32> to vector<8x32xf32>
    %88 = math.tanh %86 : vector<8x32xf32>
    %89 = arith.mulf %87, %88 : vector<8x32xf32>
    %c0_38 = arith.constant 0 : index
    %c0_39 = arith.constant 0 : index
    %90 = vector.load %arg7[%c0_38, %c0_39] : memref<8x32xf32, #tpu.memory_space<vmem>>, vector<8x32xf32>
    tpu.vector_store %arg7[%c0_38, %c0_39], %86 {strides = array<i32>} : memref<8x32xf32, #tpu.memory_space<vmem>>, vector<8x32xf32>,
    %91 = arith.index_cast %63 : i32 to index
    %c0_40 = arith.constant 0 : index
    %92 = vector.load %arg5[%91, %c0_40] : memref<64x32xf32, #tpu.memory_space<vmem>>, vector<8x32xf32>
    tpu.vector_store %arg5[%91, %c0_40], %89 {strides = array<i32>} : memref<64x32xf32, #tpu.memory_space<vmem>>, vector<8x32xf32>,
    %c3_i32 = arith.constant 3 : i32
    %c8_i32_41 = arith.constant 8 : i32
    %93 = arith.muli %c3_i32, %c8_i32_41 : i32
    %94 = tpu.assume_multiple %93, 8 : i32
    %c8_i32_42 = arith.constant 8 : i32
    %95 = arith.subi %94, %c8_i32_42 : i32
    %96 = tpu.assume_multiple %95, 8 : i32
    %97 = arith.index_cast %96 : i32 to index
    %c0_43 = arith.constant 0 : index
    %98 = vector.load %arg5[%97, %c0_43] : memref<64x32xf32, #tpu.memory_space<vmem>>, vector<8x32xf32>
    %c0_44 = arith.constant 0 : index
    %c0_45 = arith.constant 0 : index
    %99 = vector.load %arg7[%c0_44, %c0_45] : memref<8x32xf32, #tpu.memory_space<vmem>>, vector<8x32xf32>
    %100 = arith.index_cast %94 : i32 to index
    %c0_46 = arith.constant 0 : index
    %101 = vector.load %arg6[%100, %c0_46] : memref<64x128xf32, #tpu.memory_space<vmem>>, vector<8x128xf32>
    %102 = arith.truncf %98 : vector<8x32xf32> to vector<8x32xbf16>
    %cst_47 = arith.constant dense<0.000000e+00> : vector<8x128xf32>
    %103 = tpu.matmul %102, %6, %cst_47 {dimension_numbers = #tpu.dot_dimension_numbers<[1], [0], [0], [1], [0, 0, 1, 1], [], []>} : vector<8x32xbf16>, vector<32x128xbf16>, vector<8x128xf32> -> vector<8x128xf32>
    %104 = arith.addf %101, %103 : vector<8x128xf32>
    %105 = vector.extract_strided_slice %104 {offsets = [0, 0], sizes = [8, 96], strides = [1, 1]} : vector<8x128xf32> to vector<8x96xf32>
    %106 = arith.negf %105 : vector<8x96xf32>
    %107 = math.exp %106 : vector<8x96xf32>
    %cst_48 = arith.constant 1.000000e+00 : f32
    %108 = vector.broadcast %cst_48 : f32 to vector<8x96xf32>
    %109 = arith.addf %108, %107 : vector<8x96xf32>
    %110 = arith.divf %108, %109 : vector<8x96xf32>
    %111 = vector.extract_strided_slice %104 {offsets = [0, 96], sizes = [8, 32], strides = [1, 1]} : vector<8x128xf32> to vector<8x32xf32>
    %112 = math.tanh %111 : vector<8x32xf32>
    %113 = vector.extract_strided_slice %110 {offsets = [0, 32], sizes = [8, 32], strides = [1, 1]} : vector<8x96xf32> to vector<8x32xf32>
    %114 = arith.mulf %113, %99 : vector<8x32xf32>
    %115 = vector.extract_strided_slice %110 {offsets = [0, 0], sizes = [8, 32], strides = [1, 1]} : vector<8x96xf32> to vector<8x32xf32>
    %116 = arith.mulf %115, %112 : vector<8x32xf32>
    %117 = arith.addf %114, %116 : vector<8x32xf32>
    %118 = vector.extract_strided_slice %110 {offsets = [0, 64], sizes = [8, 32], strides = [1, 1]} : vector<8x96xf32> to vector<8x32xf32>
    %119 = math.tanh %117 : vector<8x32xf32>
    %120 = arith.mulf %118, %119 : vector<8x32xf32>
    %c0_49 = arith.constant 0 : index
    %c0_50 = arith.constant 0 : index
    %121 = vector.load %arg7[%c0_49, %c0_50] : memref<8x32xf32, #tpu.memory_space<vmem>>, vector<8x32xf32>
    tpu.vector_store %arg7[%c0_49, %c0_50], %117 {strides = array<i32>} : memref<8x32xf32, #tpu.memory_space<vmem>>, vector<8x32xf32>,
    %122 = arith.index_cast %94 : i32 to index
    %c0_51 = arith.constant 0 : index
    %123 = vector.load %arg5[%122, %c0_51] : memref<64x32xf32, #tpu.memory_space<vmem>>, vector<8x32xf32>
    tpu.vector_store %arg5[%122, %c0_51], %120 {strides = array<i32>} : memref<64x32xf32, #tpu.memory_space<vmem>>, vector<8x32xf32>,
    %c4_i32 = arith.constant 4 : i32
    %c8_i32_52 = arith.constant 8 : i32
    %124 = arith.muli %c4_i32, %c8_i32_52 : i32
    %125 = tpu.assume_multiple %124, 8 : i32
    %c8_i32_53 = arith.constant 8 : i32
    %126 = arith.subi %125, %c8_i32_53 : i32
    %127 = tpu.assume_multiple %126, 8 : i32
    %128 = arith.index_cast %127 : i32 to index
    %c0_54 = arith.constant 0 : index
    %129 = vector.load %arg5[%128, %c0_54] : memref<64x32xf32, #tpu.memory_space<vmem>>, vector<8x32xf32>
    %c0_55 = arith.constant 0 : index
    %c0_56 = arith.constant 0 : index
    %130 = vector.load %arg7[%c0_55, %c0_56] : memref<8x32xf32, #tpu.memory_space<vmem>>, vector<8x32xf32>
    %131 = arith.index_cast %125 : i32 to index
    %c0_57 = arith.constant 0 : index
    %132 = vector.load %arg6[%131, %c0_57] : memref<64x128xf32, #tpu.memory_space<vmem>>, vector<8x128xf32>
    %133 = arith.truncf %129 : vector<8x32xf32> to vector<8x32xbf16>
    %cst_58 = arith.constant dense<0.000000e+00> : vector<8x128xf32>
    %134 = tpu.matmul %133, %6, %cst_58 {dimension_numbers = #tpu.dot_dimension_numbers<[1], [0], [0], [1], [0, 0, 1, 1], [], []>} : vector<8x32xbf16>, vector<32x128xbf16>, vector<8x128xf32> -> vector<8x128xf32>
    %135 = arith.addf %132, %134 : vector<8x128xf32>
    %136 = vector.extract_strided_slice %135 {offsets = [0, 0], sizes = [8, 96], strides = [1, 1]} : vector<8x128xf32> to vector<8x96xf32>
    %137 = arith.negf %136 : vector<8x96xf32>
    %138 = math.exp %137 : vector<8x96xf32>
    %cst_59 = arith.constant 1.000000e+00 : f32
    %139 = vector.broadcast %cst_59 : f32 to vector<8x96xf32>
    %140 = arith.addf %139, %138 : vector<8x96xf32>
    %141 = arith.divf %139, %140 : vector<8x96xf32>
    %142 = vector.extract_strided_slice %135 {offsets = [0, 96], sizes = [8, 32], strides = [1, 1]} : vector<8x128xf32> to vector<8x32xf32>
    %143 = math.tanh %142 : vector<8x32xf32>
    %144 = vector.extract_strided_slice %141 {offsets = [0, 32], sizes = [8, 32], strides = [1, 1]} : vector<8x96xf32> to vector<8x32xf32>
    %145 = arith.mulf %144, %130 : vector<8x32xf32>
    %146 = vector.extract_strided_slice %141 {offsets = [0, 0], sizes = [8, 32], strides = [1, 1]} : vector<8x96xf32> to vector<8x32xf32>
    %147 = arith.mulf %146, %143 : vector<8x32xf32>
    %148 = arith.addf %145, %147 : vector<8x32xf32>
    %149 = vector.extract_strided_slice %141 {offsets = [0, 64], sizes = [8, 32], strides = [1, 1]} : vector<8x96xf32> to vector<8x32xf32>
    %150 = math.tanh %148 : vector<8x32xf32>
    %151 = arith.mulf %149, %150 : vector<8x32xf32>
    %c0_60 = arith.constant 0 : index
    %c0_61 = arith.constant 0 : index
    %152 = vector.load %arg7[%c0_60, %c0_61] : memref<8x32xf32, #tpu.memory_space<vmem>>, vector<8x32xf32>
    tpu.vector_store %arg7[%c0_60, %c0_61], %148 {strides = array<i32>} : memref<8x32xf32, #tpu.memory_space<vmem>>, vector<8x32xf32>,
    %153 = arith.index_cast %125 : i32 to index
    %c0_62 = arith.constant 0 : index
    %154 = vector.load %arg5[%153, %c0_62] : memref<64x32xf32, #tpu.memory_space<vmem>>, vector<8x32xf32>
    tpu.vector_store %arg5[%153, %c0_62], %151 {strides = array<i32>} : memref<64x32xf32, #tpu.memory_space<vmem>>, vector<8x32xf32>,
    %c5_i32 = arith.constant 5 : i32
    %c8_i32_63 = arith.constant 8 : i32
    %155 = arith.muli %c5_i32, %c8_i32_63 : i32
    %156 = tpu.assume_multiple %155, 8 : i32
    %c8_i32_64 = arith.constant 8 : i32
    %157 = arith.subi %156, %c8_i32_64 : i32
    %158 = tpu.assume_multiple %157, 8 : i32
    %159 = arith.index_cast %158 : i32 to index
    %c0_65 = arith.constant 0 : index
    %160 = vector.load %arg5[%159, %c0_65] : memref<64x32xf32, #tpu.memory_space<vmem>>, vector<8x32xf32>
    %c0_66 = arith.constant 0 : index
    %c0_67 = arith.constant 0 : index
    %161 = vector.load %arg7[%c0_66, %c0_67] : memref<8x32xf32, #tpu.memory_space<vmem>>, vector<8x32xf32>
    %162 = arith.index_cast %156 : i32 to index
    %c0_68 = arith.constant 0 : index
    %163 = vector.load %arg6[%162, %c0_68] : memref<64x128xf32, #tpu.memory_space<vmem>>, vector<8x128xf32>
    %164 = arith.truncf %160 : vector<8x32xf32> to vector<8x32xbf16>
    %cst_69 = arith.constant dense<0.000000e+00> : vector<8x128xf32>
    %165 = tpu.matmul %164, %6, %cst_69 {dimension_numbers = #tpu.dot_dimension_numbers<[1], [0], [0], [1], [0, 0, 1, 1], [], []>} : vector<8x32xbf16>, vector<32x128xbf16>, vector<8x128xf32> -> vector<8x128xf32>
    %166 = arith.addf %163, %165 : vector<8x128xf32>
    %167 = vector.extract_strided_slice %166 {offsets = [0, 0], sizes = [8, 96], strides = [1, 1]} : vector<8x128xf32> to vector<8x96xf32>
    %168 = arith.negf %167 : vector<8x96xf32>
    %169 = math.exp %168 : vector<8x96xf32>
    %cst_70 = arith.constant 1.000000e+00 : f32
    %170 = vector.broadcast %cst_70 : f32 to vector<8x96xf32>
    %171 = arith.addf %170, %169 : vector<8x96xf32>
    %172 = arith.divf %170, %171 : vector<8x96xf32>
    %173 = vector.extract_strided_slice %166 {offsets = [0, 96], sizes = [8, 32], strides = [1, 1]} : vector<8x128xf32> to vector<8x32xf32>
    %174 = math.tanh %173 : vector<8x32xf32>
    %175 = vector.extract_strided_slice %172 {offsets = [0, 32], sizes = [8, 32], strides = [1, 1]} : vector<8x96xf32> to vector<8x32xf32>
    %176 = arith.mulf %175, %161 : vector<8x32xf32>
    %177 = vector.extract_strided_slice %172 {offsets = [0, 0], sizes = [8, 32], strides = [1, 1]} : vector<8x96xf32> to vector<8x32xf32>
    %178 = arith.mulf %177, %174 : vector<8x32xf32>
    %179 = arith.addf %176, %178 : vector<8x32xf32>
    %180 = vector.extract_strided_slice %172 {offsets = [0, 64], sizes = [8, 32], strides = [1, 1]} : vector<8x96xf32> to vector<8x32xf32>
    %181 = math.tanh %179 : vector<8x32xf32>
    %182 = arith.mulf %180, %181 : vector<8x32xf32>
    %c0_71 = arith.constant 0 : index
    %c0_72 = arith.constant 0 : index
    %183 = vector.load %arg7[%c0_71, %c0_72] : memref<8x32xf32, #tpu.memory_space<vmem>>, vector<8x32xf32>
    tpu.vector_store %arg7[%c0_71, %c0_72], %179 {strides = array<i32>} : memref<8x32xf32, #tpu.memory_space<vmem>>, vector<8x32xf32>,
    %184 = arith.index_cast %156 : i32 to index
    %c0_73 = arith.constant 0 : index
    %185 = vector.load %arg5[%184, %c0_73] : memref<64x32xf32, #tpu.memory_space<vmem>>, vector<8x32xf32>
    tpu.vector_store %arg5[%184, %c0_73], %182 {strides = array<i32>} : memref<64x32xf32, #tpu.memory_space<vmem>>, vector<8x32xf32>,
    %c6_i32 = arith.constant 6 : i32
    %c8_i32_74 = arith.constant 8 : i32
    %186 = arith.muli %c6_i32, %c8_i32_74 : i32
    %187 = tpu.assume_multiple %186, 8 : i32
    %c8_i32_75 = arith.constant 8 : i32
    %188 = arith.subi %187, %c8_i32_75 : i32
    %189 = tpu.assume_multiple %188, 8 : i32
    %190 = arith.index_cast %189 : i32 to index
    %c0_76 = arith.constant 0 : index
    %191 = vector.load %arg5[%190, %c0_76] : memref<64x32xf32, #tpu.memory_space<vmem>>, vector<8x32xf32>
    %c0_77 = arith.constant 0 : index
    %c0_78 = arith.constant 0 : index
    %192 = vector.load %arg7[%c0_77, %c0_78] : memref<8x32xf32, #tpu.memory_space<vmem>>, vector<8x32xf32>
    %193 = arith.index_cast %187 : i32 to index
    %c0_79 = arith.constant 0 : index
    %194 = vector.load %arg6[%193, %c0_79] : memref<64x128xf32, #tpu.memory_space<vmem>>, vector<8x128xf32>
    %195 = arith.truncf %191 : vector<8x32xf32> to vector<8x32xbf16>
    %cst_80 = arith.constant dense<0.000000e+00> : vector<8x128xf32>
    %196 = tpu.matmul %195, %6, %cst_80 {dimension_numbers = #tpu.dot_dimension_numbers<[1], [0], [0], [1], [0, 0, 1, 1], [], []>} : vector<8x32xbf16>, vector<32x128xbf16>, vector<8x128xf32> -> vector<8x128xf32>
    %197 = arith.addf %194, %196 : vector<8x128xf32>
    %198 = vector.extract_strided_slice %197 {offsets = [0, 0], sizes = [8, 96], strides = [1, 1]} : vector<8x128xf32> to vector<8x96xf32>
    %199 = arith.negf %198 : vector<8x96xf32>
    %200 = math.exp %199 : vector<8x96xf32>
    %cst_81 = arith.constant 1.000000e+00 : f32
    %201 = vector.broadcast %cst_81 : f32 to vector<8x96xf32>
    %202 = arith.addf %201, %200 : vector<8x96xf32>
    %203 = arith.divf %201, %202 : vector<8x96xf32>
    %204 = vector.extract_strided_slice %197 {offsets = [0, 96], sizes = [8, 32], strides = [1, 1]} : vector<8x128xf32> to vector<8x32xf32>
    %205 = math.tanh %204 : vector<8x32xf32>
    %206 = vector.extract_strided_slice %203 {offsets = [0, 32], sizes = [8, 32], strides = [1, 1]} : vector<8x96xf32> to vector<8x32xf32>
    %207 = arith.mulf %206, %192 : vector<8x32xf32>
    %208 = vector.extract_strided_slice %203 {offsets = [0, 0], sizes = [8, 32], strides = [1, 1]} : vector<8x96xf32> to vector<8x32xf32>
    %209 = arith.mulf %208, %205 : vector<8x32xf32>
    %210 = arith.addf %207, %209 : vector<8x32xf32>
    %211 = vector.extract_strided_slice %203 {offsets = [0, 64], sizes = [8, 32], strides = [1, 1]} : vector<8x96xf32> to vector<8x32xf32>
    %212 = math.tanh %210 : vector<8x32xf32>
    %213 = arith.mulf %211, %212 : vector<8x32xf32>
    %c0_82 = arith.constant 0 : index
    %c0_83 = arith.constant 0 : index
    %214 = vector.load %arg7[%c0_82, %c0_83] : memref<8x32xf32, #tpu.memory_space<vmem>>, vector<8x32xf32>
    tpu.vector_store %arg7[%c0_82, %c0_83], %210 {strides = array<i32>} : memref<8x32xf32, #tpu.memory_space<vmem>>, vector<8x32xf32>,
    %215 = arith.index_cast %187 : i32 to index
    %c0_84 = arith.constant 0 : index
    %216 = vector.load %arg5[%215, %c0_84] : memref<64x32xf32, #tpu.memory_space<vmem>>, vector<8x32xf32>
    tpu.vector_store %arg5[%215, %c0_84], %213 {strides = array<i32>} : memref<64x32xf32, #tpu.memory_space<vmem>>, vector<8x32xf32>,
    %c7_i32 = arith.constant 7 : i32
    %c8_i32_85 = arith.constant 8 : i32
    %217 = arith.muli %c7_i32, %c8_i32_85 : i32
    %218 = tpu.assume_multiple %217, 8 : i32
    %c8_i32_86 = arith.constant 8 : i32
    %219 = arith.subi %218, %c8_i32_86 : i32
    %220 = tpu.assume_multiple %219, 8 : i32
    %221 = arith.index_cast %220 : i32 to index
    %c0_87 = arith.constant 0 : index
    %222 = vector.load %arg5[%221, %c0_87] : memref<64x32xf32, #tpu.memory_space<vmem>>, vector<8x32xf32>
    %c0_88 = arith.constant 0 : index
    %c0_89 = arith.constant 0 : index
    %223 = vector.load %arg7[%c0_88, %c0_89] : memref<8x32xf32, #tpu.memory_space<vmem>>, vector<8x32xf32>
    %224 = arith.index_cast %218 : i32 to index
    %c0_90 = arith.constant 0 : index
    %225 = vector.load %arg6[%224, %c0_90] : memref<64x128xf32, #tpu.memory_space<vmem>>, vector<8x128xf32>
    %226 = arith.truncf %222 : vector<8x32xf32> to vector<8x32xbf16>
    %cst_91 = arith.constant dense<0.000000e+00> : vector<8x128xf32>
    %227 = tpu.matmul %226, %6, %cst_91 {dimension_numbers = #tpu.dot_dimension_numbers<[1], [0], [0], [1], [0, 0, 1, 1], [], []>} : vector<8x32xbf16>, vector<32x128xbf16>, vector<8x128xf32> -> vector<8x128xf32>
    %228 = arith.addf %225, %227 : vector<8x128xf32>
    %229 = vector.extract_strided_slice %228 {offsets = [0, 0], sizes = [8, 96], strides = [1, 1]} : vector<8x128xf32> to vector<8x96xf32>
    %230 = arith.negf %229 : vector<8x96xf32>
    %231 = math.exp %230 : vector<8x96xf32>
    %cst_92 = arith.constant 1.000000e+00 : f32
    %232 = vector.broadcast %cst_92 : f32 to vector<8x96xf32>
    %233 = arith.addf %232, %231 : vector<8x96xf32>
    %234 = arith.divf %232, %233 : vector<8x96xf32>
    %235 = vector.extract_strided_slice %228 {offsets = [0, 96], sizes = [8, 32], strides = [1, 1]} : vector<8x128xf32> to vector<8x32xf32>
    %236 = math.tanh %235 : vector<8x32xf32>
    %237 = vector.extract_strided_slice %234 {offsets = [0, 32], sizes = [8, 32], strides = [1, 1]} : vector<8x96xf32> to vector<8x32xf32>
    %238 = arith.mulf %237, %223 : vector<8x32xf32>
    %239 = vector.extract_strided_slice %234 {offsets = [0, 0], sizes = [8, 32], strides = [1, 1]} : vector<8x96xf32> to vector<8x32xf32>
    %240 = arith.mulf %239, %236 : vector<8x32xf32>
    %241 = arith.addf %238, %240 : vector<8x32xf32>
    %242 = vector.extract_strided_slice %234 {offsets = [0, 64], sizes = [8, 32], strides = [1, 1]} : vector<8x96xf32> to vector<8x32xf32>
    %243 = math.tanh %241 : vector<8x32xf32>
    %244 = arith.mulf %242, %243 : vector<8x32xf32>
    %c0_93 = arith.constant 0 : index
    %c0_94 = arith.constant 0 : index
    %245 = vector.load %arg7[%c0_93, %c0_94] : memref<8x32xf32, #tpu.memory_space<vmem>>, vector<8x32xf32>
    tpu.vector_store %arg7[%c0_93, %c0_94], %241 {strides = array<i32>} : memref<8x32xf32, #tpu.memory_space<vmem>>, vector<8x32xf32>,
    %246 = arith.index_cast %218 : i32 to index
    %c0_95 = arith.constant 0 : index
    %247 = vector.load %arg5[%246, %c0_95] : memref<64x32xf32, #tpu.memory_space<vmem>>, vector<8x32xf32>
    tpu.vector_store %arg5[%246, %c0_95], %244 {strides = array<i32>} : memref<64x32xf32, #tpu.memory_space<vmem>>, vector<8x32xf32>,
    %c7_i32_96 = arith.constant 7 : i32
    return
  }
  func.func @transform_0(%arg0: i32) -> (i32, i32) {
    %c0_i32 = arith.constant 0 : i32
    %c0_i32_0 = arith.constant 0 : i32
    %c0_i32_1 = arith.constant 0 : i32
    return %c0_i32, %c0_i32_0 : i32, i32
  }
  func.func @transform_1(%arg0: i32) -> (i32, i32, i32) {
    %c0_i32 = arith.constant 0 : i32
    %c0_i32_0 = arith.constant 0 : i32
    %c0_i32_1 = arith.constant 0 : i32
    return %arg0, %c0_i32, %c0_i32_0 : i32, i32, i32
  }
  func.func @transform_2(%arg0: i32) -> (i32, i32, i32) {
    %c0_i32 = arith.constant 0 : i32
    %c0_i32_0 = arith.constant 0 : i32
    %c0_i32_1 = arith.constant 0 : i32
    return %arg0, %c0_i32, %c0_i32_0 : i32, i32, i32
  }
  func.func @transform_3(%arg0: i32) -> (i32, i32, i32) {
    %c0_i32 = arith.constant 0 : i32
    %c0_i32_0 = arith.constant 0 : i32
    %c0_i32_1 = arith.constant 0 : i32
    return %arg0, %c0_i32, %c0_i32_0 : i32, i32, i32
  }
  func.func @transform_4(%arg0: i32) -> (i32, i32) {
    %c0_i32 = arith.constant 0 : i32
    %c0_i32_0 = arith.constant 0 : i32
    %c0_i32_1 = arith.constant 0 : i32
    return %c0_i32, %c0_i32_0 : i32, i32
  }
}

</mosaic_0001>

<llo_original>
// kernel: tpu_custom_call.1
$region0: #{tpu_custom_call.1}
  #allocation0 [shape = 'u32[]', space=smem, size = 0x4, offset = 0x4, fixed_abs, tag = 'smem constant byte address 0x4 - core index']
  #allocation1 [shape = 'u32[144,128]{1,0:T(1,128)}', space=vmem, size = 0x12000, scoped, tag = 'internal scratch']
  #allocation2 [shape = 'f32[64,128]{1,0:T(8,128)}', space=vmem, size = 0x8000, scoped, tag = 'scratch operand']
  #allocation3 [shape = 'f32[8,32]{1,0:T(8,128)}', space=vmem, size = 0x1000, scoped, tag = 'scratch operand']
  %s0 = inlined_call_operand.vmem [shape: f32[64,32], index: 0, kind: input, shape index: {}]
  %s1 = inlined_call_operand.vmem [shape: bf16[2,32,128], index: 1, kind: input, shape index: {}]
  %s2 = inlined_call_operand.vmem [shape: bf16[2,32,128], index: 2, kind: input, shape index: {}]
  %s3 = inlined_call_operand.vmem [shape: f32[2,1,128], index: 3, kind: input, shape index: {}]
  %s4 = inlined_call_operand.vmem [shape: f32[64,32], index: 4, kind: output, shape index: {}]
  %s5 = sld [smem:[#allocation0]]
  $region53: #{tpu_custom_call.1} parent=0
    _
  %s7 = ssub.s32 1, %s5
  %s8 = scalar_select 0, %s7, %s5
  loop: start=0, step=1, limit=4
  $region2: #{tpu_custom_call.1} parent=0 // loop_pre_header
    _
  $region3: #{tpu_custom_call.1} parent=0 // loop_header
    %s10 = sphi 0, %s14
    %p11 = scmp.ge.s32.totalorder %s10, 4
    %s18 = sphi 0, %s18
    %s20 = sphi 0, %s18
    %s21 = sphi 0, %s20
    %s35 = sphi 0, %s21
    %s41 = sphi 0, %s43
    %s44 = sphi 0, %s41
    %s45 = sphi 0, %s44
    %s61 = sphi 0, %s45
    %s67 = sphi 0, %s69
    %s70 = sphi 0, %s67
    %s71 = sphi 0, %s70
    %s87 = sphi 0, %s71
    %s93 = sphi 0, %s95
    %s96 = sphi 0, %s93
    %s97 = sphi 0, %s96
    %s113 = sphi 0, %s97
    %s117 = sphi 0, %s117
    %s119 = sphi 0, %s117
    %s120 = sphi 0, %s119
    %s134 = sphi 0, %s120
  $region4: #{tpu_custom_call.1} parent=0 // loop_header_branch
    %13 = sbr.rel (%p11) target = $region8
  $region5: #{tpu_custom_call.1} parent=0 // loop_body
    %s15 = ssub.s32 %s10, 1
    %s16 = ssub.s32 %s10, 2
    %s17 = sadd.s32 %s10, 1
    %s19 = sadd.s32 %s18, 1
    %p22 = scmp.eq.s32.totalorder %s10, 1
    %p23 = scmp.ne.s32.totalorder %s18, %s20
    %p24 = scmp.eq.s32.totalorder %s10, 0
    %p25 = por %p23, %p24
    %p26 = scmp.ne.s32.totalorder %s18, %s20
    %p27 = scmp.eq.s32.totalorder %s15, 1
    %p28 = por %p26, %p27
    %p29 = scmp.ne.s32.totalorder %s20, %s21
    %p30 = scmp.eq.s32.totalorder %s15, 0
    %p31 = por %p29, %p30
    %p32 = scmp.ne.s32.totalorder %s20, %s21
    %p33 = scmp.eq.s32.totalorder %s16, 1
    %p34 = por %p32, %p33
    %p36 = scmp.ne.s32.totalorder %s21, %s35
    %p37 = scmp.eq.s32.totalorder %s16, 0
    %p38 = por %p36, %p37
    %s39 = ssub.s32 %s10, %s17
    %p40 = scmp.eq.s32.totalorder %s39, 0
    %s42 = sadd.s32 %s41, 1
    %s43 = scalar_select %p40, %s41, %s42
    %p46 = pneg %p40
    %p47 = scmp.eq.s32.totalorder %s10, 1
    %p48 = por %p46, %p47
    %p49 = scmp.ne.s32.totalorder %s41, %s44
    %p50 = scmp.eq.s32.totalorder %s10, 0
    %p51 = por %p49, %p50
    %p52 = scmp.ne.s32.totalorder %s41, %s44
    %p53 = scmp.eq.s32.totalorder %s15, 1
    %p54 = por %p52, %p53
    %p55 = scmp.ne.s32.totalorder %s44, %s45
    %p56 = scmp.eq.s32.totalorder %s15, 0
    %p57 = por %p55, %p56
    %p58 = scmp.ne.s32.totalorder %s44, %s45
    %p59 = scmp.eq.s32.totalorder %s16, 1
    %p60 = por %p58, %p59
    %p62 = scmp.ne.s32.totalorder %s45, %s61
    %p63 = scmp.eq.s32.totalorder %s16, 0
    %p64 = por %p62, %p63
    %s65 = ssub.s32 %s10, %s17
    %p66 = scmp.eq.s32.totalorder %s65, 0
    %s68 = sadd.s32 %s67, 1
    %s69 = scalar_select %p66, %s67, %s68
    %p72 = pneg %p66
    %p73 = scmp.eq.s32.totalorder %s10, 1
    %p74 = por %p72, %p73
    %p75 = scmp.ne.s32.totalorder %s67, %s70
    %p76 = scmp.eq.s32.totalorder %s10, 0
    %p77 = por %p75, %p76
    %p78 = scmp.ne.s32.totalorder %s67, %s70
    %p79 = scmp.eq.s32.totalorder %s15, 1
    %p80 = por %p78, %p79
    %p81 = scmp.ne.s32.totalorder %s70, %s71
    %p82 = scmp.eq.s32.totalorder %s15, 0
    %p83 = por %p81, %p82
    %p84 = scmp.ne.s32.totalorder %s70, %s71
    %p85 = scmp.eq.s32.totalorder %s16, 1
    %p86 = por %p84, %p85
    %p88 = scmp.ne.s32.totalorder %s71, %s87
    %p89 = scmp.eq.s32.totalorder %s16, 0
    %p90 = por %p88, %p89
    %s91 = ssub.s32 %s10, %s17
    %p92 = scmp.eq.s32.totalorder %s91, 0
    %s94 = sadd.s32 %s93, 1
    %s95 = scalar_select %p92, %s93, %s94
    %p98 = pneg %p92
    %p99 = scmp.eq.s32.totalorder %s10, 1
    %p100 = por %p98, %p99
    %p101 = scmp.ne.s32.totalorder %s93, %s96
    %p102 = scmp.eq.s32.totalorder %s10, 0
    %p103 = por %p101, %p102
    %p104 = scmp.ne.s32.totalorder %s93, %s96
    %p105 = scmp.eq.s32.totalorder %s15, 1
    %p106 = por %p104, %p105
    %p107 = scmp.ne.s32.totalorder %s96, %s97
    %p108 = scmp.eq.s32.totalorder %s15, 0
    %p109 = por %p107, %p108
    %p110 = scmp.ne.s32.totalorder %s96, %s97
    %p111 = scmp.eq.s32.totalorder %s16, 1
    %p112 = por %p110, %p111
    %p114 = scmp.ne.s32.totalorder %s97, %s113
    %p115 = scmp.eq.s32.totalorder %s16, 0
    %p116 = por %p114, %p115
    %s118 = sadd.s32 %s117, 1
    %p121 = scmp.eq.s32.totalorder %s10, 1
    %p122 = scmp.ne.s32.totalorder %s117, %s119
    %p123 = scmp.eq.s32.totalorder %s10, 0
    %p124 = por %p122, %p123
    %p125 = scmp.ne.s32.totalorder %s117, %s119
    %p126 = scmp.eq.s32.totalorder %s15, 1
    %p127 = por %p125, %p126
    %p128 = scmp.ne.s32.totalorder %s119, %s120
    %p129 = scmp.eq.s32.totalorder %s15, 0
    %p130 = por %p128, %p129
    %p131 = scmp.ne.s32.totalorder %s119, %s120
    %p132 = scmp.eq.s32.totalorder %s16, 1
    %p133 = por %p131, %p132
    %p135 = scmp.ne.s32.totalorder %s120, %s134
    %p136 = scmp.eq.s32.totalorder %s16, 0
    %p137 = por %p135, %p136
    %p138 = scmp.le.s32.totalorder 1, %s10
    %p139 = scmp.lt.s32.totalorder %s10, 3
    %p140 = pnand %p138, %p139
    %p141 = pneg %p140
    // Predicated region
    $region9: #{tpu_custom_call.1} parent=5 // pred_check
      _
    $region10: #{tpu_custom_call.1} parent=5 // pred_check_branch
      %143 = sbr.rel (%p140) target = $region12
    $region11: #{tpu_custom_call.1} parent=5 // pred_region
      %s144 = ssub.s32 %s10, 1
      // Predicated region
      $region13: #{tpu_custom_call.1} parent=11 // pred_check
        %p145 = pneg %p31
      $region14: #{tpu_custom_call.1} parent=11 // pred_check_branch
        %147 = sbr.rel (%p145) target = $region16
      $region15: #{tpu_custom_call.1} parent=11 // pred_region
        _
      $region16: #{tpu_custom_call.1} parent=11 // pred_fallthru
        _
    $region12: #{tpu_custom_call.1} parent=5 // pred_fallthru
      _
    %p148 = scmp.lt.s32.totalorder %s10, 2
    // Predicated region
    $region17: #{tpu_custom_call.1} parent=5 // pred_check
      %p149 = pneg %p148
    $region18: #{tpu_custom_call.1} parent=5 // pred_check_branch
      %151 = sbr.rel (%p149) target = $region20
    $region19: #{tpu_custom_call.1} parent=5 // pred_region
      // Predicated region
      $region21: #{tpu_custom_call.1} parent=19 // pred_check
        %p152 = pneg %p51
      $region22: #{tpu_custom_call.1} parent=19 // pred_check_branch
        %154 = sbr.rel (%p152) target = $region24
      $region23: #{tpu_custom_call.1} parent=19 // pred_region
        %p155 = scmp.lt.s32.totalorder %s10, 1
        %s156 = scalar_select %p155, %s10, 1
        %s157 = smul.addr %s156, 4
        %s158 = smul.addr %s157, 4
        %s159 = scalar_lea.vmem %s1, %s158
      $region24: #{tpu_custom_call.1} parent=19 // pred_fallthru
        _
      // Predicated region
      $region25: #{tpu_custom_call.1} parent=19 // pred_check
        %p160 = pneg %p77
      $region26: #{tpu_custom_call.1} parent=19 // pred_check_branch
        %162 = sbr.rel (%p160) target = $region28
      $region27: #{tpu_custom_call.1} parent=19 // pred_region
        %p163 = scmp.lt.s32.totalorder %s10, 1
        %s164 = scalar_select %p163, %s10, 1
        %s165 = smul.addr %s164, 4
        %s166 = smul.addr %s165, 4
        %s167 = scalar_lea.vmem %s2, %s166
      $region28: #{tpu_custom_call.1} parent=19 // pred_fallthru
        _
      // Predicated region
      $region29: #{tpu_custom_call.1} parent=19 // pred_check
        %p168 = pneg %p103
      $region30: #{tpu_custom_call.1} parent=19 // pred_check_branch
        %170 = sbr.rel (%p168) target = $region32
      $region31: #{tpu_custom_call.1} parent=19 // pred_region
        %p171 = scmp.lt.s32.totalorder %s10, 1
        %s172 = scalar_select %p171, %s10, 1
        %s173 = scalar_lea.vmem %s3, %s172
      $region32: #{tpu_custom_call.1} parent=19 // pred_fallthru
        _
    $region20: #{tpu_custom_call.1} parent=5 // pred_fallthru
      _
    %p174 = scmp.le.s32.totalorder 1, %s10
    %p175 = scmp.lt.s32.totalorder %s10, 3
    %p176 = pnand %p174, %p175
    %p177 = pneg %p176
    // Predicated region
    $region33: #{tpu_custom_call.1} parent=5 // pred_check
      _
    $region34: #{tpu_custom_call.1} parent=5 // pred_check_branch
      %179 = sbr.rel (%p176) target = $region36
    $region35: #{tpu_custom_call.1} parent=5 // pred_region
      %s180 = ssub.s32 %s10, 1
      %p181 = pneg %p31
      %p182 = pneg %p28
      %p183 = scmp.lt.s32.totalorder %s15, 1
      %s184 = scalar_select %p183, %s15, 1
      %s185 = smul.addr %s184, 4
      %s186 = smul.addr %s185, 4
      %s187 = scalar_lea.vmem %s1, %s186
      %p188 = pneg %p57
      %p189 = pneg %p54
      %p190 = scmp.lt.s32.totalorder %s15, 1
      %s191 = scalar_select %p190, %s15, 1
      %s192 = smul.addr %s191, 4
      %s193 = smul.addr %s192, 4
      %s194 = scalar_lea.vmem %s2, %s193
      %p195 = pneg %p83
      %p196 = pneg %p80
      %p197 = scmp.lt.s32.totalorder %s15, 1
      %s198 = scalar_select %p197, %s15, 1
      %s199 = scalar_lea.vmem %s3, %s198
      %p200 = pneg %p109
      %p201 = pneg %p106
      %p202 = pneg %p130
      %p203 = pneg %p127
      %p204 = scmp.lt.s32.totalorder %s15, 1
      %s205 = scalar_select %p204, %s15, 1
      %s206 = smul.addr %s205, 4
      %s207 = smul.addr %s206, 4
      %s208 = scalar_lea.vmem %s1, %s207
      %p209 = scmp.lt.s32.totalorder %s15, 1
      %s210 = scalar_select %p209, %s15, 1
      %s211 = smul.addr %s210, 4
      %s212 = smul.addr %s211, 4
      %s213 = scalar_lea.vmem %s2, %s212
      %p214 = scmp.lt.s32.totalorder %s15, 1
      %s215 = scalar_select %p214, %s15, 1
      %s216 = scalar_lea.vmem %s3, %s215
      %p218 = scmp.eq.s32.totalorder %s15, 0
      // Predicated region
      $region37: #{tpu_custom_call.1} parent=35 // pred_check
        %p219 = pneg %p218
      $region38: #{tpu_custom_call.1} parent=35 // pred_check_branch
        %221 = sbr.rel (%p219) target = $region40
      $region39: #{tpu_custom_call.1} parent=35 // pred_region
        %v222 = vld [vmem:[%s0] sm:$0xff]
        %v223 = vld [vmem:[%s0 + $0x8] sm:$0xff]
        %v224 = vld [vmem:[%s0 + $0x10] sm:$0xff]
        %v225 = vld [vmem:[%s0 + $0x18] sm:$0xff]
        %v226 = vld [vmem:[%s0 + $0x20] sm:$0xff]
        %v227 = vld [vmem:[%s0 + $0x28] sm:$0xff]
        %v228 = vld [vmem:[%s0 + $0x30] sm:$0xff]
        %v229 = vld [vmem:[%s0 + $0x38] sm:$0xff]
        %vm230 = vcmask 261120
        %231 = vst.msk [vmem:[%s4] sm:$0xff] %vm230, %v222
        %232 = vst.msk [vmem:[%s4 + $0x8] sm:$0xff] %vm230, %v223
        %233 = vst.msk [vmem:[%s4 + $0x10] sm:$0xff] %vm230, %v224
        %234 = vst.msk [vmem:[%s4 + $0x18] sm:$0xff] %vm230, %v225
        %235 = vst.msk [vmem:[%s4 + $0x20] sm:$0xff] %vm230, %v226
        %236 = vst.msk [vmem:[%s4 + $0x28] sm:$0xff] %vm230, %v227
        %237 = vst.msk [vmem:[%s4 + $0x30] sm:$0xff] %vm230, %v228
        %238 = vst.msk [vmem:[%s4 + $0x38] sm:$0xff] %vm230, %v229
      $region40: #{tpu_custom_call.1} parent=35 // pred_fallthru
        _
      %v239 = vld [vmem:[%s208] sm:$0xf]
      %v240 = vld [vmem:[%s208 + $0x4] sm:$0xf]
      %v241 = vld [vmem:[%s208 + $0x8] sm:$0xf]
      %v242 = vld [vmem:[%s208 + $0xc] sm:$0xf]
      %v243 = vld [vmem:[%s213] sm:$0xf]
      %v244 = vld [vmem:[%s213 + $0x4] sm:$0xf]
      %v245 = vld [vmem:[%s213 + $0x8] sm:$0xf]
      %v246 = vld [vmem:[%s213 + $0xc] sm:$0xf]
      %v247 = vld [vmem:[%s4] sm:$0xff]
      %v248 = vld [vmem:[%s4 + $0x8] sm:$0xff]
      %v249 = vld [vmem:[%s4 + $0x10] sm:$0xff]
      %v250 = vld [vmem:[%s4 + $0x18] sm:$0xff]
      %v251 = vld [vmem:[%s4 + $0x20] sm:$0xff]
      %v252 = vld [vmem:[%s4 + $0x28] sm:$0xff]
      %v253 = vld [vmem:[%s4 + $0x30] sm:$0xff]
      %v254 = vld [vmem:[%s4 + $0x38] sm:$0xff]
      %v255 = vpack.c.bf16 %v248, %v247
      %v256 = vpack.c.bf16 %v250, %v249
      %v257 = vpack.c.bf16 %v252, %v251
      %v258 = vpack.c.bf16 %v254, %v253
      %v259 = vld [vmem:[%s216] sm:$0x1]
      %v261 = vlaneseq
      %v262 = vshrl.u32 %v261, 7
      %v263 = vsub.s32 0, %v262
      %v264 = vrot.slane %v259, %v263
      %v270 = vunpack.c.l.b16 %v239
      %v271 = vunpack.c.l.b16 %v240
      %v272 = vunpack.c.l.b16 %v241
      %v273 = vunpack.c.l.b16 %v242
      %v274 = vpack.c.b16 %v271, %v270
      %v275 = vpack.c.b16 %v273, %v272
      %vm278 = vcmask 261120
      %v280 = vsel %vm278, %v255, 0
      %v283 = vsel %vm278, %v256, 0
      %v286 = vsel %vm278, %v257, 0
      %v289 = vsel %vm278, %v258, 0
      %291 = vmatprep.subr.bf16.mxu0 0
      %292 = vmatpush1.bf16.msra.mxu0 0
      %293 = vmatprep.subr.bf16.mxu0 0
      %294 = vmatpush1.bf16.msra.mxu0 0
      %295 = vmatprep.subr.bf16.mxu0 0
      %296 = vmatpush1.bf16.msra.mxu0 0
      %297 = vmatprep.subr.bf16.mxu0 0
      %298 = vmatpush1.bf16.msra.mxu0 0
      %299 = vmatprep.subr.bf16.mxu0 0
      %300 = vmatpush1.bf16.msra.mxu0 0
      %301 = vmatprep.subr.bf16.mxu0 0
      %302 = vmatpush1.bf16.msra.mxu0 0
      %303 = vmatprep.subr.bf16.mxu0 0
      %304 = vmatpush1.bf16.msra.mxu0 %v275
      %305 = vmatprep.subr.bf16.mxu0 0
      %306 = vmatpush1.bf16.msra.mxu0 %v274
      %307 = vmatprep.subr.bf16.mxu0 0
      %308 = vmatpush2.bf16.msra.mxu0 0
      %309 = vmatprep.subr.bf16.mxu0 0
      %310 = vmatpush2.bf16.msra.mxu0 0
      %311 = vmatprep.subr.bf16.mxu0 0
      %312 = vmatpush2.bf16.msra.mxu0 0
      %313 = vmatprep.subr.bf16.mxu0 0
      %314 = vmatpush2.bf16.msra.mxu0 0
      %315 = vmatprep.subr.bf16.mxu0 0
      %316 = vmatpush2.bf16.msra.mxu0 0
      %317 = vmatprep.subr.bf16.mxu0 0
      %318 = vmatpush2.bf16.msra.mxu0 0
      %319 = vmatprep.subr.bf16.mxu0 0
      %320 = vmatpush2.bf16.msra.mxu0 0
      %321 = vmatprep.subr.bf16.mxu0 0
      %322 = vmatpush2.bf16.msra.mxu0 0
      %323 = vmatprep.mubr.bf16.mxu0 0
      %324 = vmatmul.mubr.bf16.gmra.mxu0 %v280
      %v325 = vpop.f32.mrf.mxu0
      %v326 = vadd.f32 %v264, %v325
      %v327 = vpop.f32.mrf.mxu0
      %v328 = vpop.f32.mrf.mxu0
      %v329 = vadd.f32 %v264, %v328
      %v330 = vpop.f32.mrf.mxu0
      %331 = vmatprep.mubr.bf16.mxu0 0
      %332 = vmatmul.mubr.bf16.gmra.mxu0 %v283
      %v333 = vpop.f32.mrf.mxu0
      %v334 = vadd.f32 %v264, %v333
      %v335 = vpop.f32.mrf.mxu0
      %v336 = vpop.f32.mrf.mxu0
      %v337 = vadd.f32 %v264, %v336
      %v338 = vpop.f32.mrf.mxu0
      %339 = vmatprep.mubr.bf16.mxu0 0
      %340 = vmatmul.mubr.bf16.gmra.mxu0 %v286
      %v341 = vpop.f32.mrf.mxu0
      %v342 = vadd.f32 %v264, %v341
      %v343 = vpop.f32.mrf.mxu0
      %v344 = vpop.f32.mrf.mxu0
      %v345 = vadd.f32 %v264, %v344
      %v346 = vpop.f32.mrf.mxu0
      %347 = vmatprep.mubr.bf16.mxu0 0
      %348 = vmatmul.mubr.bf16.gmra.mxu0 %v289
      %v349 = vpop.f32.mrf.mxu0
      %v350 = vadd.f32 %v264, %v349
      %v351 = vpop.f32.mrf.mxu0
      %v352 = vpop.f32.mrf.mxu0
      %v353 = vadd.f32 %v264, %v352
      %v354 = vpop.f32.mrf.mxu0
      %355 = vdwg.mxu0
      %356 = vst [vmem:[#allocation2] sm:$0xff] %v326
      %357 = vst [vmem:[#allocation2 + $0x8] sm:$0xff] %v329
      %358 = vst [vmem:[#allocation2 + $0x10] sm:$0xff] %v334
      %359 = vst [vmem:[#allocation2 + $0x18] sm:$0xff] %v337
      %360 = vst [vmem:[#allocation2 + $0x20] sm:$0xff] %v342
      %361 = vst [vmem:[#allocation2 + $0x28] sm:$0xff] %v345
      %362 = vst [vmem:[#allocation2 + $0x30] sm:$0xff] %v350
      %363 = vst [vmem:[#allocation2 + $0x38] sm:$0xff] %v353
      %v364 = vld [vmem:[#allocation2] sm:$0xff]
      %v365 = vxor.u32 %v364, 2147483648
      %v366 = vmul.f32 %v365, 1.442695
      %v367 = vpow.pop %v366
      %v368 = vadd.f32 %v367, 1.0
      %v369 = vrcp.pop %v368
      %v370 = vmul.f32 1.0, %v369
      %v371 = vtanh.pop %v364
      %373 = vrot.lane.b32.xlu0 %v371, 32
      %v374 = vpop.permute.xlu0 %373
      %v376 = vmul.f32 %v370, %v374
      %v377 = vtanh.pop %v376
      %379 = vrot.lane.b32.xlu0 %v377, 64
      %v380 = vpop.permute.xlu0 %379
      %v382 = vmul.f32 %v370, %v380
      %383 = vst.msk [vmem:[#allocation3] sm:$0xff] %vm278, %v376
      %385 = vrot.lane.b32.xlu0 %v382, 64
      %v386 = vpop.permute.xlu0 %385
      %388 = vst.msk [vmem:[%s4] sm:$0xff] %vm278, %v386
      %s389 = ssub.s32 8, 8
      %s390 = scalar_lea.vmem %s4, %s389
      %v391 = vld [vmem:[%s390] sm:$0xff]
      %v392 = vld [vmem:[#allocation3] sm:$0xff]
      %s393 = scalar_lea.vmem [#allocation2], 8
      %v394 = vld [vmem:[%s393] sm:$0xff]
      %v395 = vpack.c.bf16 %v391, %v391
      %v400 = vunpack.c.l.b16 %v243
      %v401 = vunpack.c.l.b16 %v244
      %v402 = vunpack.c.l.b16 %v245
      %v403 = vunpack.c.l.b16 %v246
      %v404 = vpack.c.b16 %v401, %v400
      %v405 = vpack.c.b16 %v403, %v402
      %v409 = vsel %vm278, %v395, 0
      %411 = vmatprep.subr.bf16.mxu0 0
      %412 = vmatpush1.bf16.msra.mxu0 0
      %413 = vmatprep.subr.bf16.mxu0 0
      %414 = vmatpush1.bf16.msra.mxu0 0
      %415 = vmatprep.subr.bf16.mxu0 0
      %416 = vmatpush1.bf16.msra.mxu0 0
      %417 = vmatprep.subr.bf16.mxu0 0
      %418 = vmatpush1.bf16.msra.mxu0 0
      %419 = vmatprep.subr.bf16.mxu0 0
      %420 = vmatpush1.bf16.msra.mxu0 0
      %421 = vmatprep.subr.bf16.mxu0 0
      %422 = vmatpush1.bf16.msra.mxu0 0
      %423 = vmatprep.subr.bf16.mxu0 0
      %424 = vmatpush1.bf16.msra.mxu0 %v405
      %425 = vmatprep.subr.bf16.mxu0 0
      %426 = vmatpush1.bf16.msra.mxu0 %v404
      %427 = vmatprep.subr.bf16.mxu0 0
      %428 = vmatpush2.bf16.msra.mxu0 0
      %429 = vmatprep.subr.bf16.mxu0 0
      %430 = vmatpush2.bf16.msra.mxu0 0
      %431 = vmatprep.subr.bf16.mxu0 0
      %432 = vmatpush2.bf16.msra.mxu0 0
      %433 = vmatprep.subr.bf16.mxu0 0
      %434 = vmatpush2.bf16.msra.mxu0 0
      %435 = vmatprep.subr.bf16.mxu0 0
      %436 = vmatpush2.bf16.msra.mxu0 0
      %437 = vmatprep.subr.bf16.mxu0 0
      %438 = vmatpush2.bf16.msra.mxu0 0
      %439 = vmatprep.subr.bf16.mxu0 0
      %440 = vmatpush2.bf16.msra.mxu0 0
      %441 = vmatprep.subr.bf16.mxu0 0
      %442 = vmatpush2.bf16.msra.mxu0 0
      %443 = vmatprep.mubr.bf16.mxu0 0
      %444 = vmatmul.mubr.bf16.gmra.mxu0 %v409
      %v445 = vpop.f32.mrf.mxu0
      %v446 = vadd.f32 0.0, %v445
      %v447 = vpop.f32.mrf.mxu0
      %v448 = vpop.f32.mrf.mxu0
      %v449 = vpop.f32.mrf.mxu0
      %450 = vdwg.mxu0
      %v451 = vadd.f32 %v394, %v446
      %v452 = vxor.u32 %v451, 2147483648
      %v453 = vmul.f32 %v452, 1.442695
      %v454 = vpow.pop %v453
      %v455 = vadd.f32 %v454, 1.0
      %v456 = vrcp.pop %v455
      %v457 = vmul.f32 1.0, %v456
      %v458 = vtanh.pop %v451
      %460 = vrot.lane.b32.xlu0 %v392, 32
      %v461 = vpop.permute.xlu0 %460
      %v463 = vmul.f32 %v457, %v461
      %465 = vrot.lane.b32.xlu0 %v458, 32
      %v466 = vpop.permute.xlu0 %465
      %v468 = vmul.f32 %v457, %v466
      %470 = vrot.lane.b32.xlu0 %v468, 32
      %v471 = vpop.permute.xlu0 %470
      %v473 = vadd.f32 %v463, %v471
      %v474 = vtanh.pop %v473
      %476 = vrot.lane.b32.xlu0 %v474, 32
      %v477 = vpop.permute.xlu0 %476
      %v479 = vmul.f32 %v457, %v477
      %481 = vrot.lane.b32.xlu0 %v473, 96
      %v482 = vpop.permute.xlu0 %481
      %484 = vst.msk [vmem:[#allocation3] sm:$0xff] %vm278, %v482
      %486 = vrot.lane.b32.xlu0 %v479, 64
      %v487 = vpop.permute.xlu0 %486
      %s489 = scalar_lea.vmem %s4, 8
      %490 = vst.msk [vmem:[%s489] sm:$0xff] %vm278, %v487
      %s491 = ssub.s32 16, 8
      %s492 = scalar_lea.vmem %s4, %s491
      %v493 = vld [vmem:[%s492] sm:$0xff]
      %v494 = vld [vmem:[#allocation3] sm:$0xff]
      %s495 = scalar_lea.vmem [#allocation2], 16
      %v496 = vld [vmem:[%s495] sm:$0xff]
      %v497 = vpack.c.bf16 %v493, %v493
      %v499 = vsel %vm278, %v497, 0
      %501 = vmatprep.subr.bf16.mxu0 0
      %502 = vmatpush1.bf16.msra.mxu0 0
      %503 = vmatprep.subr.bf16.mxu0 0
      %504 = vmatpush1.bf16.msra.mxu0 0
      %505 = vmatprep.subr.bf16.mxu0 0
      %506 = vmatpush1.bf16.msra.mxu0 0
      %507 = vmatprep.subr.bf16.mxu0 0
      %508 = vmatpush1.bf16.msra.mxu0 0
      %509 = vmatprep.subr.bf16.mxu0 0
      %510 = vmatpush1.bf16.msra.mxu0 0
      %511 = vmatprep.subr.bf16.mxu0 0
      %512 = vmatpush1.bf16.msra.mxu0 0
      %513 = vmatprep.subr.bf16.mxu0 0
      %514 = vmatpush1.bf16.msra.mxu0 %v405
      %515 = vmatprep.subr.bf16.mxu0 0
      %516 = vmatpush1.bf16.msra.mxu0 %v404
      %517 = vmatprep.subr.bf16.mxu0 0
      %518 = vmatpush2.bf16.msra.mxu0 0
      %519 = vmatprep.subr.bf16.mxu0 0
      %520 = vmatpush2.bf16.msra.mxu0 0
      %521 = vmatprep.subr.bf16.mxu0 0
      %522 = vmatpush2.bf16.msra.mxu0 0
      %523 = vmatprep.subr.bf16.mxu0 0
      %524 = vmatpush2.bf16.msra.mxu0 0
      %525 = vmatprep.subr.bf16.mxu0 0
      %526 = vmatpush2.bf16.msra.mxu0 0
      %527 = vmatprep.subr.bf16.mxu0 0
      %528 = vmatpush2.bf16.msra.mxu0 0
      %529 = vmatprep.subr.bf16.mxu0 0
      %530 = vmatpush2.bf16.msra.mxu0 0
      %531 = vmatprep.subr.bf16.mxu0 0
      %532 = vmatpush2.bf16.msra.mxu0 0
      %533 = vmatprep.mubr.bf16.mxu0 0
      %534 = vmatmul.mubr.bf16.gmra.mxu0 %v499
      %v535 = vpop.f32.mrf.mxu0
      %v536 = vadd.f32 0.0, %v535
      %v537 = vpop.f32.mrf.mxu0
      %v538 = vpop.f32.mrf.mxu0
      %v539 = vpop.f32.mrf.mxu0
      %540 = vdwg.mxu0
      %v541 = vadd.f32 %v496, %v536
      %v542 = vxor.u32 %v541, 2147483648
      %v543 = vmul.f32 %v542, 1.442695
      %v544 = vpow.pop %v543
      %v545 = vadd.f32 %v544, 1.0
      %v546 = vrcp.pop %v545
      %v547 = vmul.f32 1.0, %v546
      %v548 = vtanh.pop %v541
      %550 = vrot.lane.b32.xlu0 %v494, 32
      %v551 = vpop.permute.xlu0 %550
      %v553 = vmul.f32 %v547, %v551
      %555 = vrot.lane.b32.xlu0 %v548, 32
      %v556 = vpop.permute.xlu0 %555
      %v558 = vmul.f32 %v547, %v556
      %560 = vrot.lane.b32.xlu0 %v558, 32
      %v561 = vpop.permute.xlu0 %560
      %v563 = vadd.f32 %v553, %v561
      %v564 = vtanh.pop %v563
      %566 = vrot.lane.b32.xlu0 %v564, 32
      %v567 = vpop.permute.xlu0 %566
      %v569 = vmul.f32 %v547, %v567
      %571 = vrot.lane.b32.xlu0 %v563, 96
      %v572 = vpop.permute.xlu0 %571
      %574 = vst.msk [vmem:[#allocation3] sm:$0xff] %vm278, %v572
      %576 = vrot.lane.b32.xlu0 %v569, 64
      %v577 = vpop.permute.xlu0 %576
      %s579 = scalar_lea.vmem %s4, 16
      %580 = vst.msk [vmem:[%s579] sm:$0xff] %vm278, %v577
      %s581 = ssub.s32 24, 8
      %s582 = scalar_lea.vmem %s4, %s581
      %v583 = vld [vmem:[%s582] sm:$0xff]
      %v584 = vld [vmem:[#allocation3] sm:$0xff]
      %s585 = scalar_lea.vmem [#allocation2], 24
      %v586 = vld [vmem:[%s585] sm:$0xff]
      %v587 = vpack.c.bf16 %v583, %v583
      %v589 = vsel %vm278, %v587, 0
      %591 = vmatprep.subr.bf16.mxu0 0
      %592 = vmatpush1.bf16.msra.mxu0 0
      %593 = vmatprep.subr.bf16.mxu0 0
      %594 = vmatpush1.bf16.msra.mxu0 0
      %595 = vmatprep.subr.bf16.mxu0 0
      %596 = vmatpush1.bf16.msra.mxu0 0
      %597 = vmatprep.subr.bf16.mxu0 0
      %598 = vmatpush1.bf16.msra.mxu0 0
      %599 = vmatprep.subr.bf16.mxu0 0
      %600 = vmatpush1.bf16.msra.mxu0 0
      %601 = vmatprep.subr.bf16.mxu0 0
      %602 = vmatpush1.bf16.msra.mxu0 0
      %603 = vmatprep.subr.bf16.mxu0 0
      %604 = vmatpush1.bf16.msra.mxu0 %v405
      %605 = vmatprep.subr.bf16.mxu0 0
      %606 = vmatpush1.bf16.msra.mxu0 %v404
      %607 = vmatprep.subr.bf16.mxu0 0
      %608 = vmatpush2.bf16.msra.mxu0 0
      %609 = vmatprep.subr.bf16.mxu0 0
      %610 = vmatpush2.bf16.msra.mxu0 0
      %611 = vmatprep.subr.bf16.mxu0 0
      %612 = vmatpush2.bf16.msra.mxu0 0
      %613 = vmatprep.subr.bf16.mxu0 0
      %614 = vmatpush2.bf16.msra.mxu0 0
      %615 = vmatprep.subr.bf16.mxu0 0
      %616 = vmatpush2.bf16.msra.mxu0 0
      %617 = vmatprep.subr.bf16.mxu0 0
      %618 = vmatpush2.bf16.msra.mxu0 0
      %619 = vmatprep.subr.bf16.mxu0 0
      %620 = vmatpush2.bf16.msra.mxu0 0
      %621 = vmatprep.subr.bf16.mxu0 0
      %622 = vmatpush2.bf16.msra.mxu0 0
      %623 = vmatprep.mubr.bf16.mxu0 0
      %624 = vmatmul.mubr.bf16.gmra.mxu0 %v589
      %v625 = vpop.f32.mrf.mxu0
      %v626 = vadd.f32 0.0, %v625
      %v627 = vpop.f32.mrf.mxu0
      %v628 = vpop.f32.mrf.mxu0
      %v629 = vpop.f32.mrf.mxu0
      %630 = vdwg.mxu0
      %v631 = vadd.f32 %v586, %v626
      %v632 = vxor.u32 %v631, 2147483648
      %v633 = vmul.f32 %v632, 1.442695
      %v634 = vpow.pop %v633
      %v635 = vadd.f32 %v634, 1.0
      %v636 = vrcp.pop %v635
      %v637 = vmul.f32 1.0, %v636
      %v638 = vtanh.pop %v631
      %640 = vrot.lane.b32.xlu0 %v584, 32
      %v641 = vpop.permute.xlu0 %640
      %v643 = vmul.f32 %v637, %v641
      %645 = vrot.lane.b32.xlu0 %v638, 32
      %v646 = vpop.permute.xlu0 %645
      %v648 = vmul.f32 %v637, %v646
      %650 = vrot.lane.b32.xlu0 %v648, 32
      %v651 = vpop.permute.xlu0 %650
      %v653 = vadd.f32 %v643, %v651
      %v654 = vtanh.pop %v653
      %656 = vrot.lane.b32.xlu0 %v654, 32
      %v657 = vpop.permute.xlu0 %656
      %v659 = vmul.f32 %v637, %v657
      %661 = vrot.lane.b32.xlu0 %v653, 96
      %v662 = vpop.permute.xlu0 %661
      %664 = vst.msk [vmem:[#allocation3] sm:$0xff] %vm278, %v662
      %666 = vrot.lane.b32.xlu0 %v659, 64
      %v667 = vpop.permute.xlu0 %666
      %s669 = scalar_lea.vmem %s4, 24
      %670 = vst.msk [vmem:[%s669] sm:$0xff] %vm278, %v667
      %s671 = ssub.s32 32, 8
      %s672 = scalar_lea.vmem %s4, %s671
      %v673 = vld [vmem:[%s672] sm:$0xff]
      %v674 = vld [vmem:[#allocation3] sm:$0xff]
      %s675 = scalar_lea.vmem [#allocation2], 32
      %v676 = vld [vmem:[%s675] sm:$0xff]
      %v677 = vpack.c.bf16 %v673, %v673
      %v679 = vsel %vm278, %v677, 0
      %681 = vmatprep.subr.bf16.mxu0 0
      %682 = vmatpush1.bf16.msra.mxu0 0
      %683 = vmatprep.subr.bf16.mxu0 0
      %684 = vmatpush1.bf16.msra.mxu0 0
      %685 = vmatprep.subr.bf16.mxu0 0
      %686 = vmatpush1.bf16.msra.mxu0 0
      %687 = vmatprep.subr.bf16.mxu0 0
      %688 = vmatpush1.bf16.msra.mxu0 0
      %689 = vmatprep.subr.bf16.mxu0 0
      %690 = vmatpush1.bf16.msra.mxu0 0
      %691 = vmatprep.subr.bf16.mxu0 0
      %692 = vmatpush1.bf16.msra.mxu0 0
      %693 = vmatprep.subr.bf16.mxu0 0
      %694 = vmatpush1.bf16.msra.mxu0 %v405
      %695 = vmatprep.subr.bf16.mxu0 0
      %696 = vmatpush1.bf16.msra.mxu0 %v404
      %697 = vmatprep.subr.bf16.mxu0 0
      %698 = vmatpush2.bf16.msra.mxu0 0
      %699 = vmatprep.subr.bf16.mxu0 0
      %700 = vmatpush2.bf16.msra.mxu0 0
      %701 = vmatprep.subr.bf16.mxu0 0
      %702 = vmatpush2.bf16.msra.mxu0 0
      %703 = vmatprep.subr.bf16.mxu0 0
      %704 = vmatpush2.bf16.msra.mxu0 0
      %705 = vmatprep.subr.bf16.mxu0 0
      %706 = vmatpush2.bf16.msra.mxu0 0
      %707 = vmatprep.subr.bf16.mxu0 0
      %708 = vmatpush2.bf16.msra.mxu0 0
      %709 = vmatprep.subr.bf16.mxu0 0
      %710 = vmatpush2.bf16.msra.mxu0 0
      %711 = vmatprep.subr.bf16.mxu0 0
      %712 = vmatpush2.bf16.msra.mxu0 0
      %713 = vmatprep.mubr.bf16.mxu0 0
      %714 = vmatmul.mubr.bf16.gmra.mxu0 %v679
      %v715 = vpop.f32.mrf.mxu0
      %v716 = vadd.f32 0.0, %v715
      %v717 = vpop.f32.mrf.mxu0
      %v718 = vpop.f32.mrf.mxu0
      %v719 = vpop.f32.mrf.mxu0
      %720 = vdwg.mxu0
      %v721 = vadd.f32 %v676, %v716
      %v722 = vxor.u32 %v721, 2147483648
      %v723 = vmul.f32 %v722, 1.442695
      %v724 = vpow.pop %v723
      %v725 = vadd.f32 %v724, 1.0
      %v726 = vrcp.pop %v725
      %v727 = vmul.f32 1.0, %v726
      %v728 = vtanh.pop %v721
      %730 = vrot.lane.b32.xlu0 %v674, 32
      %v731 = vpop.permute.xlu0 %730
      %v733 = vmul.f32 %v727, %v731
      %735 = vrot.lane.b32.xlu0 %v728, 32
      %v736 = vpop.permute.xlu0 %735
      %v738 = vmul.f32 %v727, %v736
      %740 = vrot.lane.b32.xlu0 %v738, 32
      %v741 = vpop.permute.xlu0 %740
      %v743 = vadd.f32 %v733, %v741
      %v744 = vtanh.pop %v743
      %746 = vrot.lane.b32.xlu0 %v744, 32
      %v747 = vpop.permute.xlu0 %746
      %v749 = vmul.f32 %v727, %v747
      %751 = vrot.lane.b32.xlu0 %v743, 96
      %v752 = vpop.permute.xlu0 %751
      %754 = vst.msk [vmem:[#allocation3] sm:$0xff] %vm278, %v752
      %756 = vrot.lane.b32.xlu0 %v749, 64
      %v757 = vpop.permute.xlu0 %756
      %s759 = scalar_lea.vmem %s4, 32
      %760 = vst.msk [vmem:[%s759] sm:$0xff] %vm278, %v757
      %s761 = ssub.s32 40, 8
      %s762 = scalar_lea.vmem %s4, %s761
      %v763 = vld [vmem:[%s762] sm:$0xff]
      %v764 = vld [vmem:[#allocation3] sm:$0xff]
      %s765 = scalar_lea.vmem [#allocation2], 40
      %v766 = vld [vmem:[%s765] sm:$0xff]
      %v767 = vpack.c.bf16 %v763, %v763
      %v769 = vsel %vm278, %v767, 0
      %771 = vmatprep.subr.bf16.mxu0 0
      %772 = vmatpush1.bf16.msra.mxu0 0
      %773 = vmatprep.subr.bf16.mxu0 0
      %774 = vmatpush1.bf16.msra.mxu0 0
      %775 = vmatprep.subr.bf16.mxu0 0
      %776 = vmatpush1.bf16.msra.mxu0 0
      %777 = vmatprep.subr.bf16.mxu0 0
      %778 = vmatpush1.bf16.msra.mxu0 0
      %779 = vmatprep.subr.bf16.mxu0 0
      %780 = vmatpush1.bf16.msra.mxu0 0
      %781 = vmatprep.subr.bf16.mxu0 0
      %782 = vmatpush1.bf16.msra.mxu0 0
      %783 = vmatprep.subr.bf16.mxu0 0
      %784 = vmatpush1.bf16.msra.mxu0 %v405
      %785 = vmatprep.subr.bf16.mxu0 0
      %786 = vmatpush1.bf16.msra.mxu0 %v404
      %787 = vmatprep.subr.bf16.mxu0 0
      %788 = vmatpush2.bf16.msra.mxu0 0
      %789 = vmatprep.subr.bf16.mxu0 0
      %790 = vmatpush2.bf16.msra.mxu0 0
      %791 = vmatprep.subr.bf16.mxu0 0
      %792 = vmatpush2.bf16.msra.mxu0 0
      %793 = vmatprep.subr.bf16.mxu0 0
      %794 = vmatpush2.bf16.msra.mxu0 0
      %795 = vmatprep.subr.bf16.mxu0 0
      %796 = vmatpush2.bf16.msra.mxu0 0
      %797 = vmatprep.subr.bf16.mxu0 0
      %798 = vmatpush2.bf16.msra.mxu0 0
      %799 = vmatprep.subr.bf16.mxu0 0
      %800 = vmatpush2.bf16.msra.mxu0 0
      %801 = vmatprep.subr.bf16.mxu0 0
      %802 = vmatpush2.bf16.msra.mxu0 0
      %803 = vmatprep.mubr.bf16.mxu0 0
      %804 = vmatmul.mubr.bf16.gmra.mxu0 %v769
      %v805 = vpop.f32.mrf.mxu0
      %v806 = vadd.f32 0.0, %v805
      %v807 = vpop.f32.mrf.mxu0
      %v808 = vpop.f32.mrf.mxu0
      %v809 = vpop.f32.mrf.mxu0
      %810 = vdwg.mxu0
      %v811 = vadd.f32 %v766, %v806
      %v812 = vxor.u32 %v811, 2147483648
      %v813 = vmul.f32 %v812, 1.442695
      %v814 = vpow.pop %v813
      %v815 = vadd.f32 %v814, 1.0
      %v816 = vrcp.pop %v815
      %v817 = vmul.f32 1.0, %v816
      %v818 = vtanh.pop %v811
      %820 = vrot.lane.b32.xlu0 %v764, 32
      %v821 = vpop.permute.xlu0 %820
      %v823 = vmul.f32 %v817, %v821
      %825 = vrot.lane.b32.xlu0 %v818, 32
      %v826 = vpop.permute.xlu0 %825
      %v828 = vmul.f32 %v817, %v826
      %830 = vrot.lane.b32.xlu0 %v828, 32
      %v831 = vpop.permute.xlu0 %830
      %v833 = vadd.f32 %v823, %v831
      %v834 = vtanh.pop %v833
      %836 = vrot.lane.b32.xlu0 %v834, 32
      %v837 = vpop.permute.xlu0 %836
      %v839 = vmul.f32 %v817, %v837
      %841 = vrot.lane.b32.xlu0 %v833, 96
      %v842 = vpop.permute.xlu0 %841
      %844 = vst.msk [vmem:[#allocation3] sm:$0xff] %vm278, %v842
      %846 = vrot.lane.b32.xlu0 %v839, 64
      %v847 = vpop.permute.xlu0 %846
      %s849 = scalar_lea.vmem %s4, 40
      %850 = vst.msk [vmem:[%s849] sm:$0xff] %vm278, %v847
      %s851 = ssub.s32 48, 8
      %s852 = scalar_lea.vmem %s4, %s851
      %v853 = vld [vmem:[%s852] sm:$0xff]
      %v854 = vld [vmem:[#allocation3] sm:$0xff]
      %s855 = scalar_lea.vmem [#allocation2], 48
      %v856 = vld [vmem:[%s855] sm:$0xff]
      %v857 = vpack.c.bf16 %v853, %v853
      %v859 = vsel %vm278, %v857, 0
      %861 = vmatprep.subr.bf16.mxu0 0
      %862 = vmatpush1.bf16.msra.mxu0 0
      %863 = vmatprep.subr.bf16.mxu0 0
      %864 = vmatpush1.bf16.msra.mxu0 0
      %865 = vmatprep.subr.bf16.mxu0 0
      %866 = vmatpush1.bf16.msra.mxu0 0
      %867 = vmatprep.subr.bf16.mxu0 0
      %868 = vmatpush1.bf16.msra.mxu0 0
      %869 = vmatprep.subr.bf16.mxu0 0
      %870 = vmatpush1.bf16.msra.mxu0 0
      %871 = vmatprep.subr.bf16.mxu0 0
      %872 = vmatpush1.bf16.msra.mxu0 0
      %873 = vmatprep.subr.bf16.mxu0 0
      %874 = vmatpush1.bf16.msra.mxu0 %v405
      %875 = vmatprep.subr.bf16.mxu0 0
      %876 = vmatpush1.bf16.msra.mxu0 %v404
      %877 = vmatprep.subr.bf16.mxu0 0
      %878 = vmatpush2.bf16.msra.mxu0 0
      %879 = vmatprep.subr.bf16.mxu0 0
      %880 = vmatpush2.bf16.msra.mxu0 0
      %881 = vmatprep.subr.bf16.mxu0 0
      %882 = vmatpush2.bf16.msra.mxu0 0
      %883 = vmatprep.subr.bf16.mxu0 0
      %884 = vmatpush2.bf16.msra.mxu0 0
      %885 = vmatprep.subr.bf16.mxu0 0
      %886 = vmatpush2.bf16.msra.mxu0 0
      %887 = vmatprep.subr.bf16.mxu0 0
      %888 = vmatpush2.bf16.msra.mxu0 0
      %889 = vmatprep.subr.bf16.mxu0 0
      %890 = vmatpush2.bf16.msra.mxu0 0
      %891 = vmatprep.subr.bf16.mxu0 0
      %892 = vmatpush2.bf16.msra.mxu0 0
      %893 = vmatprep.mubr.bf16.mxu0 0
      %894 = vmatmul.mubr.bf16.gmra.mxu0 %v859
      %v895 = vpop.f32.mrf.mxu0
      %v896 = vadd.f32 0.0, %v895
      %v897 = vpop.f32.mrf.mxu0
      %v898 = vpop.f32.mrf.mxu0
      %v899 = vpop.f32.mrf.mxu0
      %900 = vdwg.mxu0
      %v901 = vadd.f32 %v856, %v896
      %v902 = vxor.u32 %v901, 2147483648
      %v903 = vmul.f32 %v902, 1.442695
      %v904 = vpow.pop %v903
      %v905 = vadd.f32 %v904, 1.0
      %v906 = vrcp.pop %v905
      %v907 = vmul.f32 1.0, %v906
      %v908 = vtanh.pop %v901
      %910 = vrot.lane.b32.xlu0 %v854, 32
      %v911 = vpop.permute.xlu0 %910
      %v913 = vmul.f32 %v907, %v911
      %915 = vrot.lane.b32.xlu0 %v908, 32
      %v916 = vpop.permute.xlu0 %915
      %v918 = vmul.f32 %v907, %v916
      %920 = vrot.lane.b32.xlu0 %v918, 32
      %v921 = vpop.permute.xlu0 %920
      %v923 = vadd.f32 %v913, %v921
      %v924 = vtanh.pop %v923
      %926 = vrot.lane.b32.xlu0 %v924, 32
      %v927 = vpop.permute.xlu0 %926
      %v929 = vmul.f32 %v907, %v927
      %931 = vrot.lane.b32.xlu0 %v923, 96
      %v932 = vpop.permute.xlu0 %931
      %934 = vst.msk [vmem:[#allocation3] sm:$0xff] %vm278, %v932
      %936 = vrot.lane.b32.xlu0 %v929, 64
      %v937 = vpop.permute.xlu0 %936
      %s939 = scalar_lea.vmem %s4, 48
      %940 = vst.msk [vmem:[%s939] sm:$0xff] %vm278, %v937
      %s941 = ssub.s32 56, 8
      %s942 = scalar_lea.vmem %s4, %s941
      %v943 = vld [vmem:[%s942] sm:$0xff]
      %v944 = vld [vmem:[#allocation3] sm:$0xff]
      %s945 = scalar_lea.vmem [#allocation2], 56
      %v946 = vld [vmem:[%s945] sm:$0xff]
      %v947 = vpack.c.bf16 %v943, %v943
      %v949 = vsel %vm278, %v947, 0
      %951 = vmatprep.subr.bf16.mxu0 0
      %952 = vmatpush1.bf16.msra.mxu0 0
      %953 = vmatprep.subr.bf16.mxu0 0
      %954 = vmatpush1.bf16.msra.mxu0 0
      %955 = vmatprep.subr.bf16.mxu0 0
      %956 = vmatpush1.bf16.msra.mxu0 0
      %957 = vmatprep.subr.bf16.mxu0 0
      %958 = vmatpush1.bf16.msra.mxu0 0
      %959 = vmatprep.subr.bf16.mxu0 0
      %960 = vmatpush1.bf16.msra.mxu0 0
      %961 = vmatprep.subr.bf16.mxu0 0
      %962 = vmatpush1.bf16.msra.mxu0 0
      %963 = vmatprep.subr.bf16.mxu0 0
      %964 = vmatpush1.bf16.msra.mxu0 %v405
      %965 = vmatprep.subr.bf16.mxu0 0
      %966 = vmatpush1.bf16.msra.mxu0 %v404
      %967 = vmatprep.subr.bf16.mxu0 0
      %968 = vmatpush2.bf16.msra.mxu0 0
      %969 = vmatprep.subr.bf16.mxu0 0
      %970 = vmatpush2.bf16.msra.mxu0 0
      %971 = vmatprep.subr.bf16.mxu0 0
      %972 = vmatpush2.bf16.msra.mxu0 0
      %973 = vmatprep.subr.bf16.mxu0 0
      %974 = vmatpush2.bf16.msra.mxu0 0
      %975 = vmatprep.subr.bf16.mxu0 0
      %976 = vmatpush2.bf16.msra.mxu0 0
      %977 = vmatprep.subr.bf16.mxu0 0
      %978 = vmatpush2.bf16.msra.mxu0 0
      %979 = vmatprep.subr.bf16.mxu0 0
      %980 = vmatpush2.bf16.msra.mxu0 0
      %981 = vmatprep.subr.bf16.mxu0 0
      %982 = vmatpush2.bf16.msra.mxu0 0
      %983 = vmatprep.mubr.bf16.mxu0 0
      %984 = vmatmul.mubr.bf16.gmra.mxu0 %v949
      %v985 = vpop.f32.mrf.mxu0
      %v986 = vadd.f32 0.0, %v985
      %v987 = vpop.f32.mrf.mxu0
      %v988 = vpop.f32.mrf.mxu0
      %v989 = vpop.f32.mrf.mxu0
      %990 = vdwg.mxu0
      %v991 = vadd.f32 %v946, %v986
      %v992 = vxor.u32 %v991, 2147483648
      %v993 = vmul.f32 %v992, 1.442695
      %v994 = vpow.pop %v993
      %v995 = vadd.f32 %v994, 1.0
      %v996 = vrcp.pop %v995
      %v997 = vmul.f32 1.0, %v996
      %v998 = vtanh.pop %v991
      %1000 = vrot.lane.b32.xlu0 %v944, 32
      %v1001 = vpop.permute.xlu0 %1000
      %v1003 = vmul.f32 %v997, %v1001
      %1005 = vrot.lane.b32.xlu0 %v998, 32
      %v1006 = vpop.permute.xlu0 %1005
      %v1008 = vmul.f32 %v997, %v1006
      %1010 = vrot.lane.b32.xlu0 %v1008, 32
      %v1011 = vpop.permute.xlu0 %1010
      %v1013 = vadd.f32 %v1003, %v1011
      %v1014 = vtanh.pop %v1013
      %1016 = vrot.lane.b32.xlu0 %v1014, 32
      %v1017 = vpop.permute.xlu0 %1016
      %v1019 = vmul.f32 %v997, %v1017
      %1021 = vrot.lane.b32.xlu0 %v1013, 96
      %v1022 = vpop.permute.xlu0 %1021
      %1024 = vst.msk [vmem:[#allocation3] sm:$0xff] %vm278, %v1022
      %1026 = vrot.lane.b32.xlu0 %v1019, 64
      %v1027 = vpop.permute.xlu0 %1026
      %s1029 = scalar_lea.vmem %s4, 56
      %1030 = vst.msk [vmem:[%s1029] sm:$0xff] %vm278, %v1027
      // Predicated region
      $region41: #{tpu_custom_call.1} parent=35 // pred_check
        %p1031 = pneg %p127
      $region42: #{tpu_custom_call.1} parent=35 // pred_check_branch
        %1033 = sbr.rel (%p1031) target = $region44
      $region43: #{tpu_custom_call.1} parent=35 // pred_region
        _
      $region44: #{tpu_custom_call.1} parent=35 // pred_fallthru
        _
      // Predicated region
      $region45: #{tpu_custom_call.1} parent=35 // pred_check
        %p1034 = pneg %p127
      $region46: #{tpu_custom_call.1} parent=35 // pred_check_branch
        %1036 = sbr.rel (%p1034) target = $region48
      $region47: #{tpu_custom_call.1} parent=35 // pred_region
        _
      $region48: #{tpu_custom_call.1} parent=35 // pred_fallthru
        _
    $region36: #{tpu_custom_call.1} parent=5 // pred_fallthru
      _
    %p1037 = scmp.le.s32.totalorder 2, %s10
    // Predicated region
    $region49: #{tpu_custom_call.1} parent=5 // pred_check
      %p1038 = pneg %p1037
    $region50: #{tpu_custom_call.1} parent=5 // pred_check_branch
      %1040 = sbr.rel (%p1038) target = $region52
    $region51: #{tpu_custom_call.1} parent=5 // pred_region
      %s1041 = ssub.s32 %s10, 2
    $region52: #{tpu_custom_call.1} parent=5 // pred_fallthru
      _
  $region6: #{tpu_custom_call.1} parent=0 // loop_footer
    %s14 = sadd.s32 1, %s10
  $region7: #{tpu_custom_call.1} parent=0 // loop_footer_branch
    %9 = sbr.rel target = $region3
  $region8: #{tpu_custom_call.1} parent=0 // loop_exit
    _

</llo_original>
